<compile_context>
chip_gen: v5e
topology: v5e:2x2
jax: 0.10.0
libtpu: 0.0.40
codegen_flags: <defaults>
</compile_context>

<pallas_src>
import math
import functools
import jax
import jax.numpy as jnp
from jax import lax
from jax.experimental import pallas as pl
from jax.experimental.pallas import tpu as pltpu

d_k = d_v = 16
d_model = 64
n_heads = 4


def mha_encoder_kernel(xq_ref, xk_ref, xv_ref, bias_ref,
                       wq_ref, wk_ref, wv_ref, wfc_ref,
                       out_ref, attn_ref, *, Bb, S):
    # Flat row layout: (Bb*S, d_model).  x_q is also the residual.
    x_q = xq_ref[...]
    x_k = xk_ref[...]
    x_v = xv_ref[...]

    scale = 1.0 / math.sqrt(d_k)

    # Single big projections: (Bb*S, 64) @ (64, 64) -> fills the MXU M dim.
    Q = jnp.dot(x_q, wq_ref[...], preferred_element_type=jnp.float32) * scale
    K = jnp.dot(x_k, wk_ref[...], preferred_element_type=jnp.float32)
    V = jnp.dot(x_v, wv_ref[...], preferred_element_type=jnp.float32)

    # Split the (cheap) leading dim back out; last dim is preserved.
    Qb = Q.reshape(Bb, S, n_heads * d_k)
    Kb = K.reshape(Bb, S, n_heads * d_k)
    Vb = V.reshape(Bb, S, n_heads * d_v)

    bias = bias_ref[...]                       # (Bb, H, S, S), mask pre-folded

    # Residual; output projection is accumulated per head (no lane concat).
    out_acc = x_q.astype(jnp.float32)          # (Bb*S, d_model)

    for h in range(n_heads):                   # static unroll over heads
        q_h = Qb[:, :, h * d_k:(h + 1) * d_k]  # (Bb, S, d_k)
        k_h = Kb[:, :, h * d_k:(h + 1) * d_k]
        v_h = Vb[:, :, h * d_v:(h + 1) * d_v]

        # scores[b,i,j] = sum_d q[b,i,d] * k[b,j,d]  (lane-axis contraction,
        # batched over Bb -- no transpose materialized)
        scores = lax.dot_general(
            q_h, k_h,
            dimension_numbers=(((2,), (2,)), ((0,), (0,))),
            preferred_element_type=jnp.float32)            # (Bb, S, S)
        scores = scores + bias[:, h]

        # numerically-stable softmax along the key axis
        m = jnp.max(scores, axis=-1, keepdims=True)
        e = jnp.exp(scores - m)
        denom = jnp.sum(e, axis=-1, keepdims=True)
        attn = e * pl.reciprocal(denom)                    # exact reciprocal
        attn_ref[:, h, :, :] = attn.astype(attn_ref.dtype)

        # context for this head, batched over Bb
        ctx_h = lax.dot_general(
            attn, v_h,
            dimension_numbers=(((2,), (1,)), ((0,), (0,))),
            preferred_element_type=jnp.float32)            # (Bb, S, d_v)

        # accumulate output projection with a sublane slice of W_fc^T
        out_acc = out_acc + jnp.dot(
            ctx_h.reshape(Bb * S, d_v),
            wfc_ref[h * d_v:(h + 1) * d_v, :],
            preferred_element_type=jnp.float32)            # (Bb*S, d_model)

    # LayerNorm(d_model) with default weight=1, bias=0, eps=1e-5
    mean = jnp.mean(out_acc, axis=-1, keepdims=True)
    var = jnp.mean((out_acc - mean) ** 2, axis=-1, keepdims=True)
    out_ref[...] = ((out_acc - mean) * lax.rsqrt(var + 1e-5)).astype(out_ref.dtype)


def _pick_block_batch(B, S, target_rows=128):
    """Largest divisor Bb of B with Bb*S <= target_rows, preferring >= 2 grid
    blocks so megacore / both v7x TensorCores get work."""
    divisors = [d for d in range(1, B + 1) if B % d == 0]
    fit = [d for d in divisors if d * S <= target_rows] or [1]
    two_blocks = [d for d in fit if B // d >= 2]
    return max(two_blocks) if two_blocks else max(fit)


def multi_head_attention_encoder(input_Q, input_K, input_V, attn_mask, MD_bias,
                                 W_Q, W_K, W_V, W_fc):
    """input_Q/K/V: (B, S, d_model); attn_mask: (B, S, S) bool;
    MD_bias: (B, H, S, S); W_*: PyTorch nn.Linear weights (out, in)."""
    B, S, _ = input_Q.shape
    Bb = _pick_block_batch(B, S)
    grid = (B // Bb,)
    rows = Bb * S

    # Flatten rows so the kernel sees natural (rows, d_model) slabs (free view).
    xq = input_Q.reshape(B * S, d_model)
    xk = input_K.reshape(B * S, d_model)
    xv = input_V.reshape(B * S, d_model)

    # Fold the boolean mask into the additive bias: masked_fill(-1e9) and
    # "+(-1e9)" give identical softmax results in f32 (exp underflows to 0).
    bias_masked = MD_bias + jnp.where(attn_mask[:, None, :, :],
                                      jnp.float32(-1e9), jnp.float32(0.0))

    # Pre-transpose nn.Linear weights so the kernel computes x @ W^T directly.
    wq_t = W_Q.T
    wk_t = W_K.T
    wv_t = W_V.T
    wfc_t = W_fc.T

    kernel = functools.partial(mha_encoder_kernel, Bb=Bb, S=S)

    out_shapes = (
        jax.ShapeDtypeStruct((B * S, d_model), jnp.float32),
        jax.ShapeDtypeStruct((B, n_heads, S, S), jnp.float32),
    )

    out_flat, attn = pl.pallas_call(
        kernel,
        out_shape=out_shapes,
        grid_spec=pltpu.PrefetchScalarGridSpec(
            num_scalar_prefetch=0,
            grid=grid,
            in_specs=[
                pl.BlockSpec((rows, d_model), lambda b: (b, 0)),          # x_q (flat)
                pl.BlockSpec((rows, d_model), lambda b: (b, 0)),          # x_k (flat)
                pl.BlockSpec((rows, d_model), lambda b: (b, 0)),          # x_v (flat)
                pl.BlockSpec((Bb, n_heads, S, S),
                             lambda b: (b, 0, 0, 0)),                     # bias(+mask)
                pl.BlockSpec((d_model, n_heads * d_k), lambda b: (0, 0)),  # W_Q^T
                pl.BlockSpec((d_model, n_heads * d_k), lambda b: (0, 0)),  # W_K^T
                pl.BlockSpec((d_model, n_heads * d_v), lambda b: (0, 0)),  # W_V^T
                pl.BlockSpec((n_heads * d_v, d_model), lambda b: (0, 0)),  # W_fc^T
            ],
            out_specs=[
                pl.BlockSpec((rows, d_model), lambda b: (b, 0)),          # LN output
                pl.BlockSpec((Bb, n_heads, S, S),
                             lambda b: (b, 0, 0, 0)),                     # attention
            ],
        ),
        compiler_params=pltpu.CompilerParams(
            dimension_semantics=("parallel",)),
    )(xq, xk, xv, bias_masked, wq_t, wk_t, wv_t, wfc_t)

    return out_flat.reshape(B, S, d_model), attn


def _reference(input_Q, input_K, input_V, attn_mask, MD_bias, W_Q, W_K, W_V, W_fc):
    B, S, _ = input_Q.shape

    def split_heads(x, W, d):
        y = x @ W.T
        return y.reshape(B, S, n_heads, d).transpose(0, 2, 1, 3)

    Q = split_heads(input_Q, W_Q, d_k)
    K = split_heads(input_K, W_K, d_k)
    V = split_heads(input_V, W_V, d_v)
    scores = jnp.einsum("bhqd,bhkd->bhqk", Q, K) / math.sqrt(d_k) + MD_bias
    scores = jnp.where(attn_mask[:, None, :, :], -1e9, scores)
    attn = jax.nn.softmax(scores, axis=-1)
    ctx = jnp.einsum("bhqk,bhkd->bhqd", attn, V)
    ctx = ctx.transpose(0, 2, 1, 3).reshape(B, S, n_heads * d_v)
    out = ctx @ W_fc.T + input_Q
    mean = out.mean(-1, keepdims=True)
    var = ((out - mean) ** 2).mean(-1, keepdims=True)
    return (out - mean) / jnp.sqrt(var + 1e-5), attn


if __name__ == "__main__":
    B, S = 2, 8
    key = jax.random.PRNGKey(0)
    ks = jax.random.split(key, 8)

    input_Q = jax.random.normal(ks[0], (B, S, d_model), jnp.float32)
    input_K = input_Q   # encoder self-attention: Q=K=V
    input_V = input_Q
    # padding-style mask: last 2 key positions masked out
    attn_mask = jnp.zeros((B, S, S), dtype=bool).at[:, :, -2:].set(True)
    MD_bias = 0.1 * jax.random.normal(ks[1], (B, n_heads, S, S), jnp.float32)

    # deterministic "Linear" weights, PyTorch layout (out_features, in_features)
    scale = 1.0 / math.sqrt(d_model)
    W_Q = scale * jax.random.normal(ks[2], (n_heads * d_k, d_model), jnp.float32)
    W_K = scale * jax.random.normal(ks[3], (n_heads * d_k, d_model), jnp.float32)
    W_V = scale * jax.random.normal(ks[4], (n_heads * d_v, d_model), jnp.float32)
    W_fc = scale * jax.random.normal(ks[5], (d_model, n_heads * d_v), jnp.float32)

    out, attn = multi_head_attention_encoder(
        input_Q, input_K, input_V, attn_mask, MD_bias, W_Q, W_K, W_V, W_fc)
    jax.block_until_ready((out, attn))

    out_ref, attn_ref = _reference(
        input_Q, input_K, input_V, attn_mask, MD_bias, W_Q, W_K, W_V, W_fc)
    assert jnp.allclose(out, out_ref, atol=1e-4, rtol=1e-4)
    assert jnp.allclose(attn, attn_ref, atol=1e-5, rtol=1e-4)

    print("KERNEL_OK")
</pallas_src>

<mosaic_0001>
module attributes {stable_mosaic.version = 11 : i64} {
  func.func @mha_encoder_kernel(%arg0: i32, %arg1: memref<8x64xf32, #tpu.memory_space<vmem>>, %arg2: memref<8x64xf32, #tpu.memory_space<vmem>>, %arg3: memref<8x64xf32, #tpu.memory_space<vmem>>, %arg4: memref<1x4x8x8xf32, #tpu.memory_space<vmem>>, %arg5: memref<64x64xf32, #tpu.memory_space<vmem>>, %arg6: memref<64x64xf32, #tpu.memory_space<vmem>>, %arg7: memref<64x64xf32, #tpu.memory_space<vmem>>, %arg8: memref<64x64xf32, #tpu.memory_space<vmem>>, %arg9: memref<8x64xf32, #tpu.memory_space<vmem>>, %arg10: memref<1x4x8x8xf32, #tpu.memory_space<vmem>>) attributes {dimension_semantics = [#tpu.dimension_semantics<parallel>], iteration_bounds = array<i64: 2>, scalar_prefetch = 0 : i64, scratch_operands = 0 : i64, tpu.core_type = #tpu.core_type<tc>, window_params = [{transform_indices = @transform_0, window_bounds = array<i64: 8, 64>}, {transform_indices = @transform_1, window_bounds = array<i64: 8, 64>}, {transform_indices = @transform_2, window_bounds = array<i64: 8, 64>}, {transform_indices = @transform_3, window_bounds = array<i64: 1, 4, 8, 8>}, {pipeline_mode = #tpu.pipeline_mode<synchronous>, transform_indices = @transform_4, window_bounds = array<i64: 64, 64>}, {pipeline_mode = #tpu.pipeline_mode<synchronous>, transform_indices = @transform_5, window_bounds = array<i64: 64, 64>}, {pipeline_mode = #tpu.pipeline_mode<synchronous>, transform_indices = @transform_6, window_bounds = array<i64: 64, 64>}, {pipeline_mode = #tpu.pipeline_mode<synchronous>, transform_indices = @transform_7, window_bounds = array<i64: 64, 64>}, {transform_indices = @transform_8, window_bounds = array<i64: 8, 64>}, {transform_indices = @transform_9, window_bounds = array<i64: 1, 4, 8, 8>}]} {
    %c0 = arith.constant 0 : index
    %c0_0 = arith.constant 0 : index
    %0 = vector.load %arg1[%c0, %c0_0] : memref<8x64xf32, #tpu.memory_space<vmem>>, vector<8x64xf32>
    %c0_1 = arith.constant 0 : index
    %c0_2 = arith.constant 0 : index
    %1 = vector.load %arg2[%c0_1, %c0_2] : memref<8x64xf32, #tpu.memory_space<vmem>>, vector<8x64xf32>
    %c0_3 = arith.constant 0 : index
    %c0_4 = arith.constant 0 : index
    %2 = vector.load %arg3[%c0_3, %c0_4] : memref<8x64xf32, #tpu.memory_space<vmem>>, vector<8x64xf32>
    %c0_5 = arith.constant 0 : index
    %c0_6 = arith.constant 0 : index
    %3 = vector.load %arg5[%c0_5, %c0_6] : memref<64x64xf32, #tpu.memory_space<vmem>>, vector<64x64xf32>
    %cst = arith.constant dense<0.000000e+00> : vector<8x64xf32>
    %4 = tpu.matmul %0, %3, %cst {dimension_numbers = #tpu.dot_dimension_numbers<[1], [0], [0], [1], [0, 0, 1, 1], [], []>} : vector<8x64xf32>, vector<64x64xf32>, vector<8x64xf32> -> vector<8x64xf32>
    %cst_7 = arith.constant 2.500000e-01 : f32
    %5 = vector.broadcast %cst_7 : f32 to vector<8x64xf32>
    %6 = arith.mulf %4, %5 : vector<8x64xf32>
    %c0_8 = arith.constant 0 : index
    %c0_9 = arith.constant 0 : index
    %7 = vector.load %arg6[%c0_8, %c0_9] : memref<64x64xf32, #tpu.memory_space<vmem>>, vector<64x64xf32>
    %cst_10 = arith.constant dense<0.000000e+00> : vector<8x64xf32>
    %8 = tpu.matmul %1, %7, %cst_10 {dimension_numbers = #tpu.dot_dimension_numbers<[1], [0], [0], [1], [0, 0, 1, 1], [], []>} : vector<8x64xf32>, vector<64x64xf32>, vector<8x64xf32> -> vector<8x64xf32>
    %c0_11 = arith.constant 0 : index
    %c0_12 = arith.constant 0 : index
    %9 = vector.load %arg7[%c0_11, %c0_12] : memref<64x64xf32, #tpu.memory_space<vmem>>, vector<64x64xf32>
    %cst_13 = arith.constant dense<0.000000e+00> : vector<8x64xf32>
    %10 = tpu.matmul %2, %9, %cst_13 {dimension_numbers = #tpu.dot_dimension_numbers<[1], [0], [0], [1], [0, 0, 1, 1], [], []>} : vector<8x64xf32>, vector<64x64xf32>, vector<8x64xf32> -> vector<8x64xf32>
    %11 = vector.shape_cast %6 : vector<8x64xf32> to vector<1x8x64xf32>
    %12 = vector.shape_cast %8 : vector<8x64xf32> to vector<1x8x64xf32>
    %13 = vector.shape_cast %10 : vector<8x64xf32> to vector<1x8x64xf32>
    %c0_14 = arith.constant 0 : index
    %c0_15 = arith.constant 0 : index
    %c0_16 = arith.constant 0 : index
    %c0_17 = arith.constant 0 : index
    %14 = vector.load %arg4[%c0_14, %c0_15, %c0_16, %c0_17] : memref<1x4x8x8xf32, #tpu.memory_space<vmem>>, vector<1x4x8x8xf32>
    %15 = vector.extract_strided_slice %11 {offsets = [0, 0, 0], sizes = [1, 8, 16], strides = [1, 1, 1]} : vector<1x8x64xf32> to vector<1x8x16xf32>
    %16 = vector.extract_strided_slice %12 {offsets = [0, 0, 0], sizes = [1, 8, 16], strides = [1, 1, 1]} : vector<1x8x64xf32> to vector<1x8x16xf32>
    %17 = vector.extract_strided_slice %13 {offsets = [0, 0, 0], sizes = [1, 8, 16], strides = [1, 1, 1]} : vector<1x8x64xf32> to vector<1x8x16xf32>
    %cst_18 = arith.constant dense<0.000000e+00> : vector<1x8x8xf32>
    %18 = tpu.matmul %15, %16, %cst_18 {dimension_numbers = #tpu.dot_dimension_numbers<[2], [2], [1], [1], [0, 0, 0, 1, 1, 1], [0], [0]>} : vector<1x8x16xf32>, vector<1x8x16xf32>, vector<1x8x8xf32> -> vector<1x8x8xf32>
    %19 = vector.extract_strided_slice %14 {offsets = [0, 0, 0, 0], sizes = [1, 1, 8, 8], strides = [1, 1, 1, 1]} : vector<1x4x8x8xf32> to vector<1x1x8x8xf32>
    %20 = vector.shape_cast %19 : vector<1x1x8x8xf32> to vector<1x8x8xf32>
    %21 = arith.addf %18, %20 : vector<1x8x8xf32>
    %cst_19 = arith.constant dense<0xFF800000> : vector<1x8xf32>
    %22 = vector.multi_reduction <maximumf>, %21, %cst_19 [2] : vector<1x8x8xf32> to vector<1x8xf32>
    %23 = vector.shape_cast %22 : vector<1x8xf32> to vector<1x8x1xf32>
    %24 = vector.broadcast %23 : vector<1x8x1xf32> to vector<1x8x8xf32>
    %25 = arith.subf %21, %24 : vector<1x8x8xf32>
    %26 = math.exp %25 : vector<1x8x8xf32>
    %cst_20 = arith.constant dense<0.000000e+00> : vector<1x8xf32>
    %27 = vector.multi_reduction <add>, %26, %cst_20 [2] : vector<1x8x8xf32> to vector<1x8xf32>
    %28 = vector.shape_cast %27 : vector<1x8xf32> to vector<1x8x1xf32>
    %29 = tpu.reciprocal %28 : vector<1x8x1xf32> -> vector<1x8x1xf32>
    %30 = vector.broadcast %29 : vector<1x8x1xf32> to vector<1x8x8xf32>
    %31 = arith.mulf %26, %30 : vector<1x8x8xf32>
    %c0_21 = arith.constant 0 : index
    %c0_22 = arith.constant 0 : index
    %c0_23 = arith.constant 0 : index
    %c0_24 = arith.constant 0 : index
    %32 = vector.load %arg10[%c0_21, %c0_22, %c0_23, %c0_24] : memref<1x4x8x8xf32, #tpu.memory_space<vmem>>, vector<1x1x8x8xf32>
    %33 = vector.shape_cast %32 : vector<1x1x8x8xf32> to vector<1x8x8xf32>
    %34 = vector.shape_cast %31 : vector<1x8x8xf32> to vector<1x1x8x8xf32>
    tpu.vector_store %arg10[%c0_21, %c0_22, %c0_23, %c0_24], %34 {strides = array<i32>} : memref<1x4x8x8xf32, #tpu.memory_space<vmem>>, vector<1x1x8x8xf32>,
    %cst_25 = arith.constant dense<0.000000e+00> : vector<1x8x16xf32>
    %35 = tpu.matmul %31, %17, %cst_25 {dimension_numbers = #tpu.dot_dimension_numbers<[2], [1], [1], [2], [0, 0, 0, 1, 1, 2], [0], [0]>} : vector<1x8x8xf32>, vector<1x8x16xf32>, vector<1x8x16xf32> -> vector<1x8x16xf32>
    %36 = vector.shape_cast %35 : vector<1x8x16xf32> to vector<8x16xf32>
    %c0_26 = arith.constant 0 : index
    %c0_27 = arith.constant 0 : index
    %37 = vector.load %arg8[%c0_26, %c0_27] : memref<64x64xf32, #tpu.memory_space<vmem>>, vector<16x64xf32>
    %cst_28 = arith.constant dense<0.000000e+00> : vector<8x64xf32>
    %38 = tpu.matmul %36, %37, %cst_28 {dimension_numbers = #tpu.dot_dimension_numbers<[1], [0], [0], [1], [0, 0, 1, 1], [], []>} : vector<8x16xf32>, vector<16x64xf32>, vector<8x64xf32> -> vector<8x64xf32>
    %39 = arith.addf %0, %38 : vector<8x64xf32>
    %40 = vector.extract_strided_slice %11 {offsets = [0, 0, 16], sizes = [1, 8, 16], strides = [1, 1, 1]} : vector<1x8x64xf32> to vector<1x8x16xf32>
    %41 = vector.extract_strided_slice %12 {offsets = [0, 0, 16], sizes = [1, 8, 16], strides = [1, 1, 1]} : vector<1x8x64xf32> to vector<1x8x16xf32>
    %42 = vector.extract_strided_slice %13 {offsets = [0, 0, 16], sizes = [1, 8, 16], strides = [1, 1, 1]} : vector<1x8x64xf32> to vector<1x8x16xf32>
    %cst_29 = arith.constant dense<0.000000e+00> : vector<1x8x8xf32>
    %43 = tpu.matmul %40, %41, %cst_29 {dimension_numbers = #tpu.dot_dimension_numbers<[2], [2], [1], [1], [0, 0, 0, 1, 1, 1], [0], [0]>} : vector<1x8x16xf32>, vector<1x8x16xf32>, vector<1x8x8xf32> -> vector<1x8x8xf32>
    %44 = vector.extract_strided_slice %14 {offsets = [0, 1, 0, 0], sizes = [1, 1, 8, 8], strides = [1, 1, 1, 1]} : vector<1x4x8x8xf32> to vector<1x1x8x8xf32>
    %45 = vector.shape_cast %44 : vector<1x1x8x8xf32> to vector<1x8x8xf32>
    %46 = arith.addf %43, %45 : vector<1x8x8xf32>
    %cst_30 = arith.constant dense<0xFF800000> : vector<1x8xf32>
    %47 = vector.multi_reduction <maximumf>, %46, %cst_30 [2] : vector<1x8x8xf32> to vector<1x8xf32>
    %48 = vector.shape_cast %47 : vector<1x8xf32> to vector<1x8x1xf32>
    %49 = vector.broadcast %48 : vector<1x8x1xf32> to vector<1x8x8xf32>
    %50 = arith.subf %46, %49 : vector<1x8x8xf32>
    %51 = math.exp %50 : vector<1x8x8xf32>
    %cst_31 = arith.constant dense<0.000000e+00> : vector<1x8xf32>
    %52 = vector.multi_reduction <add>, %51, %cst_31 [2] : vector<1x8x8xf32> to vector<1x8xf32>
    %53 = vector.shape_cast %52 : vector<1x8xf32> to vector<1x8x1xf32>
    %54 = tpu.reciprocal %53 : vector<1x8x1xf32> -> vector<1x8x1xf32>
    %55 = vector.broadcast %54 : vector<1x8x1xf32> to vector<1x8x8xf32>
    %56 = arith.mulf %51, %55 : vector<1x8x8xf32>
    %c0_32 = arith.constant 0 : index
    %c1 = arith.constant 1 : index
    %c0_33 = arith.constant 0 : index
    %c0_34 = arith.constant 0 : index
    %57 = vector.load %arg10[%c0_32, %c1, %c0_33, %c0_34] : memref<1x4x8x8xf32, #tpu.memory_space<vmem>>, vector<1x1x8x8xf32>
    %58 = vector.shape_cast %57 : vector<1x1x8x8xf32> to vector<1x8x8xf32>
    %59 = vector.shape_cast %56 : vector<1x8x8xf32> to vector<1x1x8x8xf32>
    tpu.vector_store %arg10[%c0_32, %c1, %c0_33, %c0_34], %59 {strides = array<i32>} : memref<1x4x8x8xf32, #tpu.memory_space<vmem>>, vector<1x1x8x8xf32>,
    %cst_35 = arith.constant dense<0.000000e+00> : vector<1x8x16xf32>
    %60 = tpu.matmul %56, %42, %cst_35 {dimension_numbers = #tpu.dot_dimension_numbers<[2], [1], [1], [2], [0, 0, 0, 1, 1, 2], [0], [0]>} : vector<1x8x8xf32>, vector<1x8x16xf32>, vector<1x8x16xf32> -> vector<1x8x16xf32>
    %61 = vector.shape_cast %60 : vector<1x8x16xf32> to vector<8x16xf32>
    %c16 = arith.constant 16 : index
    %c0_36 = arith.constant 0 : index
    %62 = vector.load %arg8[%c16, %c0_36] : memref<64x64xf32, #tpu.memory_space<vmem>>, vector<16x64xf32>
    %cst_37 = arith.constant dense<0.000000e+00> : vector<8x64xf32>
    %63 = tpu.matmul %61, %62, %cst_37 {dimension_numbers = #tpu.dot_dimension_numbers<[1], [0], [0], [1], [0, 0, 1, 1], [], []>} : vector<8x16xf32>, vector<16x64xf32>, vector<8x64xf32> -> vector<8x64xf32>
    %64 = arith.addf %39, %63 : vector<8x64xf32>
    %65 = vector.extract_strided_slice %11 {offsets = [0, 0, 32], sizes = [1, 8, 16], strides = [1, 1, 1]} : vector<1x8x64xf32> to vector<1x8x16xf32>
    %66 = vector.extract_strided_slice %12 {offsets = [0, 0, 32], sizes = [1, 8, 16], strides = [1, 1, 1]} : vector<1x8x64xf32> to vector<1x8x16xf32>
    %67 = vector.extract_strided_slice %13 {offsets = [0, 0, 32], sizes = [1, 8, 16], strides = [1, 1, 1]} : vector<1x8x64xf32> to vector<1x8x16xf32>
    %cst_38 = arith.constant dense<0.000000e+00> : vector<1x8x8xf32>
    %68 = tpu.matmul %65, %66, %cst_38 {dimension_numbers = #tpu.dot_dimension_numbers<[2], [2], [1], [1], [0, 0, 0, 1, 1, 1], [0], [0]>} : vector<1x8x16xf32>, vector<1x8x16xf32>, vector<1x8x8xf32> -> vector<1x8x8xf32>
    %69 = vector.extract_strided_slice %14 {offsets = [0, 2, 0, 0], sizes = [1, 1, 8, 8], strides = [1, 1, 1, 1]} : vector<1x4x8x8xf32> to vector<1x1x8x8xf32>
    %70 = vector.shape_cast %69 : vector<1x1x8x8xf32> to vector<1x8x8xf32>
    %71 = arith.addf %68, %70 : vector<1x8x8xf32>
    %cst_39 = arith.constant dense<0xFF800000> : vector<1x8xf32>
    %72 = vector.multi_reduction <maximumf>, %71, %cst_39 [2] : vector<1x8x8xf32> to vector<1x8xf32>
    %73 = vector.shape_cast %72 : vector<1x8xf32> to vector<1x8x1xf32>
    %74 = vector.broadcast %73 : vector<1x8x1xf32> to vector<1x8x8xf32>
    %75 = arith.subf %71, %74 : vector<1x8x8xf32>
    %76 = math.exp %75 : vector<1x8x8xf32>
    %cst_40 = arith.constant dense<0.000000e+00> : vector<1x8xf32>
    %77 = vector.multi_reduction <add>, %76, %cst_40 [2] : vector<1x8x8xf32> to vector<1x8xf32>
    %78 = vector.shape_cast %77 : vector<1x8xf32> to vector<1x8x1xf32>
    %79 = tpu.reciprocal %78 : vector<1x8x1xf32> -> vector<1x8x1xf32>
    %80 = vector.broadcast %79 : vector<1x8x1xf32> to vector<1x8x8xf32>
    %81 = arith.mulf %76, %80 : vector<1x8x8xf32>
    %c0_41 = arith.constant 0 : index
    %c2 = arith.constant 2 : index
    %c0_42 = arith.constant 0 : index
    %c0_43 = arith.constant 0 : index
    %82 = vector.load %arg10[%c0_41, %c2, %c0_42, %c0_43] : memref<1x4x8x8xf32, #tpu.memory_space<vmem>>, vector<1x1x8x8xf32>
    %83 = vector.shape_cast %82 : vector<1x1x8x8xf32> to vector<1x8x8xf32>
    %84 = vector.shape_cast %81 : vector<1x8x8xf32> to vector<1x1x8x8xf32>
    tpu.vector_store %arg10[%c0_41, %c2, %c0_42, %c0_43], %84 {strides = array<i32>} : memref<1x4x8x8xf32, #tpu.memory_space<vmem>>, vector<1x1x8x8xf32>,
    %cst_44 = arith.constant dense<0.000000e+00> : vector<1x8x16xf32>
    %85 = tpu.matmul %81, %67, %cst_44 {dimension_numbers = #tpu.dot_dimension_numbers<[2], [1], [1], [2], [0, 0, 0, 1, 1, 2], [0], [0]>} : vector<1x8x8xf32>, vector<1x8x16xf32>, vector<1x8x16xf32> -> vector<1x8x16xf32>
    %86 = vector.shape_cast %85 : vector<1x8x16xf32> to vector<8x16xf32>
    %c32 = arith.constant 32 : index
    %c0_45 = arith.constant 0 : index
    %87 = vector.load %arg8[%c32, %c0_45] : memref<64x64xf32, #tpu.memory_space<vmem>>, vector<16x64xf32>
    %cst_46 = arith.constant dense<0.000000e+00> : vector<8x64xf32>
    %88 = tpu.matmul %86, %87, %cst_46 {dimension_numbers = #tpu.dot_dimension_numbers<[1], [0], [0], [1], [0, 0, 1, 1], [], []>} : vector<8x16xf32>, vector<16x64xf32>, vector<8x64xf32> -> vector<8x64xf32>
    %89 = arith.addf %64, %88 : vector<8x64xf32>
    %90 = vector.extract_strided_slice %11 {offsets = [0, 0, 48], sizes = [1, 8, 16], strides = [1, 1, 1]} : vector<1x8x64xf32> to vector<1x8x16xf32>
    %91 = vector.extract_strided_slice %12 {offsets = [0, 0, 48], sizes = [1, 8, 16], strides = [1, 1, 1]} : vector<1x8x64xf32> to vector<1x8x16xf32>
    %92 = vector.extract_strided_slice %13 {offsets = [0, 0, 48], sizes = [1, 8, 16], strides = [1, 1, 1]} : vector<1x8x64xf32> to vector<1x8x16xf32>
    %cst_47 = arith.constant dense<0.000000e+00> : vector<1x8x8xf32>
    %93 = tpu.matmul %90, %91, %cst_47 {dimension_numbers = #tpu.dot_dimension_numbers<[2], [2], [1], [1], [0, 0, 0, 1, 1, 1], [0], [0]>} : vector<1x8x16xf32>, vector<1x8x16xf32>, vector<1x8x8xf32> -> vector<1x8x8xf32>
    %94 = vector.extract_strided_slice %14 {offsets = [0, 3, 0, 0], sizes = [1, 1, 8, 8], strides = [1, 1, 1, 1]} : vector<1x4x8x8xf32> to vector<1x1x8x8xf32>
    %95 = vector.shape_cast %94 : vector<1x1x8x8xf32> to vector<1x8x8xf32>
    %96 = arith.addf %93, %95 : vector<1x8x8xf32>
    %cst_48 = arith.constant dense<0xFF800000> : vector<1x8xf32>
    %97 = vector.multi_reduction <maximumf>, %96, %cst_48 [2] : vector<1x8x8xf32> to vector<1x8xf32>
    %98 = vector.shape_cast %97 : vector<1x8xf32> to vector<1x8x1xf32>
    %99 = vector.broadcast %98 : vector<1x8x1xf32> to vector<1x8x8xf32>
    %100 = arith.subf %96, %99 : vector<1x8x8xf32>
    %101 = math.exp %100 : vector<1x8x8xf32>
    %cst_49 = arith.constant dense<0.000000e+00> : vector<1x8xf32>
    %102 = vector.multi_reduction <add>, %101, %cst_49 [2] : vector<1x8x8xf32> to vector<1x8xf32>
    %103 = vector.shape_cast %102 : vector<1x8xf32> to vector<1x8x1xf32>
    %104 = tpu.reciprocal %103 : vector<1x8x1xf32> -> vector<1x8x1xf32>
    %105 = vector.broadcast %104 : vector<1x8x1xf32> to vector<1x8x8xf32>
    %106 = arith.mulf %101, %105 : vector<1x8x8xf32>
    %c0_50 = arith.constant 0 : index
    %c3 = arith.constant 3 : index
    %c0_51 = arith.constant 0 : index
    %c0_52 = arith.constant 0 : index
    %107 = vector.load %arg10[%c0_50, %c3, %c0_51, %c0_52] : memref<1x4x8x8xf32, #tpu.memory_space<vmem>>, vector<1x1x8x8xf32>
    %108 = vector.shape_cast %107 : vector<1x1x8x8xf32> to vector<1x8x8xf32>
    %109 = vector.shape_cast %106 : vector<1x8x8xf32> to vector<1x1x8x8xf32>
    tpu.vector_store %arg10[%c0_50, %c3, %c0_51, %c0_52], %109 {strides = array<i32>} : memref<1x4x8x8xf32, #tpu.memory_space<vmem>>, vector<1x1x8x8xf32>,
    %cst_53 = arith.constant dense<0.000000e+00> : vector<1x8x16xf32>
    %110 = tpu.matmul %106, %92, %cst_53 {dimension_numbers = #tpu.dot_dimension_numbers<[2], [1], [1], [2], [0, 0, 0, 1, 1, 2], [0], [0]>} : vector<1x8x8xf32>, vector<1x8x16xf32>, vector<1x8x16xf32> -> vector<1x8x16xf32>
    %111 = vector.shape_cast %110 : vector<1x8x16xf32> to vector<8x16xf32>
    %c48 = arith.constant 48 : index
    %c0_54 = arith.constant 0 : index
    %112 = vector.load %arg8[%c48, %c0_54] : memref<64x64xf32, #tpu.memory_space<vmem>>, vector<16x64xf32>
    %cst_55 = arith.constant dense<0.000000e+00> : vector<8x64xf32>
    %113 = tpu.matmul %111, %112, %cst_55 {dimension_numbers = #tpu.dot_dimension_numbers<[1], [0], [0], [1], [0, 0, 1, 1], [], []>} : vector<8x16xf32>, vector<16x64xf32>, vector<8x64xf32> -> vector<8x64xf32>
    %114 = arith.addf %89, %113 : vector<8x64xf32>
    %cst_56 = arith.constant dense<0.000000e+00> : vector<8xf32>
    %115 = vector.multi_reduction <add>, %114, %cst_56 [1] : vector<8x64xf32> to vector<8xf32>
    %116 = vector.shape_cast %115 : vector<8xf32> to vector<8x1xf32>
    %cst_57 = arith.constant 6.400000e+01 : f32
    %117 = vector.broadcast %cst_57 : f32 to vector<8x1xf32>
    %118 = arith.divf %116, %117 : vector<8x1xf32>
    %119 = vector.broadcast %118 : vector<8x1xf32> to vector<8x64xf32>
    %120 = arith.subf %114, %119 : vector<8x64xf32>
    %121 = arith.mulf %120, %120 : vector<8x64xf32>
    %cst_58 = arith.constant dense<0.000000e+00> : vector<8xf32>
    %122 = vector.multi_reduction <add>, %121, %cst_58 [1] : vector<8x64xf32> to vector<8xf32>
    %123 = vector.shape_cast %122 : vector<8xf32> to vector<8x1xf32>
    %cst_59 = arith.constant 6.400000e+01 : f32
    %124 = vector.broadcast %cst_59 : f32 to vector<8x1xf32>
    %125 = arith.divf %123, %124 : vector<8x1xf32>
    %126 = vector.broadcast %118 : vector<8x1xf32> to vector<8x64xf32>
    %127 = arith.subf %114, %126 : vector<8x64xf32>
    %cst_60 = arith.constant 9.99999974E-6 : f32
    %128 = vector.broadcast %cst_60 : f32 to vector<8x1xf32>
    %129 = arith.addf %125, %128 : vector<8x1xf32>
    %130 = math.rsqrt %129 : vector<8x1xf32>
    %131 = vector.broadcast %130 : vector<8x1xf32> to vector<8x64xf32>
    %132 = arith.mulf %127, %131 : vector<8x64xf32>
    %c0_61 = arith.constant 0 : index
    %c0_62 = arith.constant 0 : index
    %133 = vector.load %arg9[%c0_61, %c0_62] : memref<8x64xf32, #tpu.memory_space<vmem>>, vector<8x64xf32>
    tpu.vector_store %arg9[%c0_61, %c0_62], %132 {strides = array<i32>} : memref<8x64xf32, #tpu.memory_space<vmem>>, vector<8x64xf32>,
    return
  }
  func.func @transform_0(%arg0: i32) -> (i32, i32) {
    %c0_i32 = arith.constant 0 : i32
    %c0_i32_0 = arith.constant 0 : i32
    return %arg0, %c0_i32 : i32, i32
  }
  func.func @transform_1(%arg0: i32) -> (i32, i32) {
    %c0_i32 = arith.constant 0 : i32
    %c0_i32_0 = arith.constant 0 : i32
    return %arg0, %c0_i32 : i32, i32
  }
  func.func @transform_2(%arg0: i32) -> (i32, i32) {
    %c0_i32 = arith.constant 0 : i32
    %c0_i32_0 = arith.constant 0 : i32
    return %arg0, %c0_i32 : i32, i32
  }
  func.func @transform_3(%arg0: i32) -> (i32, i32, i32, i32) {
    %c0_i32 = arith.constant 0 : i32
    %c0_i32_0 = arith.constant 0 : i32
    %c0_i32_1 = arith.constant 0 : i32
    %c0_i32_2 = arith.constant 0 : i32
    return %arg0, %c0_i32, %c0_i32_0, %c0_i32_1 : i32, i32, i32, i32
  }
  func.func @transform_4(%arg0: i32) -> (i32, i32) {
    %c0_i32 = arith.constant 0 : i32
    %c0_i32_0 = arith.constant 0 : i32
    %c0_i32_1 = arith.constant 0 : i32
    return %c0_i32, %c0_i32_0 : i32, i32
  }
  func.func @transform_5(%arg0: i32) -> (i32, i32) {
    %c0_i32 = arith.constant 0 : i32
    %c0_i32_0 = arith.constant 0 : i32
    %c0_i32_1 = arith.constant 0 : i32
    return %c0_i32, %c0_i32_0 : i32, i32
  }
  func.func @transform_6(%arg0: i32) -> (i32, i32) {
    %c0_i32 = arith.constant 0 : i32
    %c0_i32_0 = arith.constant 0 : i32
    %c0_i32_1 = arith.constant 0 : i32
    return %c0_i32, %c0_i32_0 : i32, i32
  }
  func.func @transform_7(%arg0: i32) -> (i32, i32) {
    %c0_i32 = arith.constant 0 : i32
    %c0_i32_0 = arith.constant 0 : i32
    %c0_i32_1 = arith.constant 0 : i32
    return %c0_i32, %c0_i32_0 : i32, i32
  }
  func.func @transform_8(%arg0: i32) -> (i32, i32) {
    %c0_i32 = arith.constant 0 : i32
    %c0_i32_0 = arith.constant 0 : i32
    return %arg0, %c0_i32 : i32, i32
  }
  func.func @transform_9(%arg0: i32) -> (i32, i32, i32, i32) {
    %c0_i32 = arith.constant 0 : i32
    %c0_i32_0 = arith.constant 0 : i32
    %c0_i32_1 = arith.constant 0 : i32
    %c0_i32_2 = arith.constant 0 : i32
    return %arg0, %c0_i32, %c0_i32_0, %c0_i32_1 : i32, i32, i32, i32
  }
}

</mosaic_0001>

<llo_original>
// kernel: tpu_custom_call.1
$region0: #{tpu_custom_call.1}
  #allocation0 [shape = 'u32[]', space=smem, size = 0x4, offset = 0x4, fixed_abs, tag = 'smem constant byte address 0x4 - core index']
  #allocation1 [shape = 'u32[72,128]{1,0:T(1,128)}', space=vmem, size = 0x9000, scoped, tag = 'internal scratch']
  %s0 = inlined_call_operand.hbm [shape: f32[16,64], index: 0, kind: input, shape index: {}]
  %s1 = inlined_call_operand.hbm [shape: f32[16,64], index: 1, kind: input, shape index: {}]
  %s2 = inlined_call_operand.hbm [shape: f32[16,64], index: 2, kind: input, shape index: {}]
  %s3 = inlined_call_operand.hbm [shape: f32[2,4,8,8], index: 3, kind: input, shape index: {}]
  %s4 = inlined_call_operand.hbm [shape: f32[64,64], index: 4, kind: input, shape index: {}]
  %s5 = inlined_call_operand.hbm [shape: f32[64,64], index: 5, kind: input, shape index: {}]
  %s6 = inlined_call_operand.hbm [shape: f32[64,64], index: 6, kind: input, shape index: {}]
  %s7 = inlined_call_operand.hbm [shape: f32[64,64], index: 7, kind: input, shape index: {}]
  %s8 = inlined_call_operand.hbm [shape: f32[16,64], index: 8, kind: output, shape index: {0}]
  %s9 = inlined_call_operand.hbm [shape: f32[2,4,8,8], index: 9, kind: output, shape index: {1}]
  %10 = xla_tuple %s8, %s9
  %s11 = sld [smem:[#allocation0]]
  $region105: #{tpu_custom_call.1} parent=0
    _
  %s13 = ssub.s32 1, %s11
  %s14 = scalar_select 0, %s13, %s11
  $region1: #{tpu_custom_call.1} parent=0
    #allocation2 [shape = 'u8[8192]{0}', space=vmem, size = 0x2000, scoped, tag = 'input window, operand 0']
    #allocation3 [shape = 's32[2]{0}', space=sflag, size = 0x8, scoped, tag = 'scoped memory for tpu_custom_call.1']
    #allocation4 [shape = 's32[2]{0}', space=sflag, size = 0x8, scoped, tag = 'scoped memory for tpu_custom_call.1']
    #allocation5 [shape = 'u8[8192]{0}', space=vmem, size = 0x2000, scoped, tag = 'input window, operand 1']
    #allocation6 [shape = 's32[2]{0}', space=sflag, size = 0x8, scoped, tag = 'scoped memory for tpu_custom_call.1']
    #allocation7 [shape = 'u8[8192]{0}', space=vmem, size = 0x2000, scoped, tag = 'input window, operand 2']
    #allocation8 [shape = 'u8[32768]{0}', space=vmem, size = 0x8000, scoped, tag = 'input window, operand 3']
    #allocation9 [shape = 's32[2]{0}', space=sflag, size = 0x8, scoped, tag = 'scoped memory for tpu_custom_call.1']
    #allocation10 [shape = 'u8[32768]{0}', space=vmem, size = 0x8000, scoped, tag = 'input window, operand 4, single buffered']
    #allocation11 [shape = 'u8[32768]{0}', space=vmem, size = 0x8000, scoped, tag = 'input window, operand 5, single buffered']
    #allocation12 [shape = 's32[1]{0}', space=sflag, size = 0x4, scoped, tag = 'scoped memory for tpu_custom_call.1']
    #allocation13 [shape = 'u8[32768]{0}', space=vmem, size = 0x8000, scoped, tag = 'input window, operand 6, single buffered']
    #allocation14 [shape = 'u8[32768]{0}', space=vmem, size = 0x8000, scoped, tag = 'input window, operand 7, single buffered']
    #allocation15 [shape = 's32[1]{0}', space=sflag, size = 0x4, scoped, tag = 'scoped memory for tpu_custom_call.1']
    #allocation16 [shape = 'u8[8192]{0}', space=vmem, size = 0x2000, scoped, tag = 'output window, operand 0']
    #allocation17 [shape = 'u8[32768]{0}', space=vmem, size = 0x8000, scoped, tag = 'output window, operand 1']
    #allocation18 [shape = 's32[2]{0}', space=sflag, size = 0x8, scoped, tag = 'scoped memory for tpu_custom_call.1']
    %15 = vsyncpa [#allocation3], 0
    %s16 = scalar_lea.sflag [#allocation3], 1
    %17 = vsyncpa %s16, 0
    %18 = vsyncpa [#allocation6], 0
    %s19 = scalar_lea.sflag [#allocation6], 1
    %20 = vsyncpa %s19, 0
    %21 = vsyncpa [#allocation9], 0
    %s22 = scalar_lea.sflag [#allocation9], 1
    %23 = vsyncpa %s22, 0
    %24 = vsyncpa [#allocation12], 0
    %25 = vsyncpa [#allocation15], 0
    %26 = vsyncpa [#allocation4], 0
    %s27 = scalar_lea.sflag [#allocation4], 1
    %28 = vsyncpa %s27, 0
    %29 = vsyncpa [#allocation18], 0
    %s30 = scalar_lea.sflag [#allocation18], 1
    %31 = vsyncpa %s30, 0
    loop: start=0, step=1, limit=4
    $region2: #{tpu_custom_call.1} parent=1 // loop_pre_header
      _
    $region3: #{tpu_custom_call.1} parent=1 // loop_header
      %s33 = sphi 0, %s37
      %p34 = scmp.ge.s32.totalorder %s33, 4
      %s43 = sphi 0, %s45
      %s46 = sphi 0, %s43
      %s47 = sphi 0, %s46
      %s63 = sphi 0, %s47
      %s69 = sphi 0, %s71
      %s72 = sphi 0, %s69
      %s73 = sphi 0, %s72
      %s89 = sphi 0, %s73
      %s95 = sphi 0, %s97
      %s98 = sphi 0, %s95
      %s99 = sphi 0, %s98
      %s115 = sphi 0, %s99
      %s121 = sphi 0, %s123
      %s124 = sphi 0, %s121
      %s125 = sphi 0, %s124
      %s141 = sphi 0, %s125
      %s145 = sphi 0, %s145
      %s147 = sphi 0, %s145
      %s148 = sphi 0, %s147
      %s162 = sphi 0, %s148
      %s166 = sphi 0, %s166
      %s168 = sphi 0, %s166
      %s169 = sphi 0, %s168
      %s183 = sphi 0, %s169
      %s187 = sphi 0, %s187
      %s189 = sphi 0, %s187
      %s190 = sphi 0, %s189
      %s204 = sphi 0, %s190
      %s208 = sphi 0, %s208
      %s210 = sphi 0, %s208
      %s211 = sphi 0, %s210
      %s225 = sphi 0, %s211
      %s231 = sphi 0, %s233
      %s234 = sphi 0, %s231
      %s235 = sphi 0, %s234
      %s251 = sphi 0, %s235
      %s257 = sphi 0, %s259
      %s260 = sphi 0, %s257
      %s261 = sphi 0, %s260
      %s277 = sphi 0, %s261
    $region4: #{tpu_custom_call.1} parent=1 // loop_header_branch
      %36 = sbr.rel (%p34) target = $region8
    $region5: #{tpu_custom_call.1} parent=1 // loop_body
      %s38 = ssub.s32 %s33, 1
      %s39 = ssub.s32 %s33, 2
      %s40 = sadd.s32 %s33, 1
      %s41 = ssub.s32 %s33, %s40
      %p42 = scmp.eq.s32.totalorder %s41, 0
      %s44 = sadd.s32 %s43, 1
      %s45 = scalar_select %p42, %s43, %s44
      %p48 = pneg %p42
      %p49 = scmp.eq.s32.totalorder %s33, 1
      %p50 = por %p48, %p49
      %p51 = scmp.ne.s32.totalorder %s43, %s46
      %p52 = scmp.eq.s32.totalorder %s33, 0
      %p53 = por %p51, %p52
      %p54 = scmp.ne.s32.totalorder %s43, %s46
      %p55 = scmp.eq.s32.totalorder %s38, 1
      %p56 = por %p54, %p55
      %p57 = scmp.ne.s32.totalorder %s46, %s47
      %p58 = scmp.eq.s32.totalorder %s38, 0
      %p59 = por %p57, %p58
      %p60 = scmp.ne.s32.totalorder %s46, %s47
      %p61 = scmp.eq.s32.totalorder %s39, 1
      %p62 = por %p60, %p61
      %p64 = scmp.ne.s32.totalorder %s47, %s63
      %p65 = scmp.eq.s32.totalorder %s39, 0
      %p66 = por %p64, %p65
      %s67 = ssub.s32 %s33, %s40
      %p68 = scmp.eq.s32.totalorder %s67, 0
      %s70 = sadd.s32 %s69, 1
      %s71 = scalar_select %p68, %s69, %s70
      %p74 = pneg %p68
      %p75 = scmp.eq.s32.totalorder %s33, 1
      %p76 = por %p74, %p75
      %p77 = scmp.ne.s32.totalorder %s69, %s72
      %p78 = scmp.eq.s32.totalorder %s33, 0
      %p79 = por %p77, %p78
      %p80 = scmp.ne.s32.totalorder %s69, %s72
      %p81 = scmp.eq.s32.totalorder %s38, 1
      %p82 = por %p80, %p81
      %p83 = scmp.ne.s32.totalorder %s72, %s73
      %p84 = scmp.eq.s32.totalorder %s38, 0
      %p85 = por %p83, %p84
      %p86 = scmp.ne.s32.totalorder %s72, %s73
      %p87 = scmp.eq.s32.totalorder %s39, 1
      %p88 = por %p86, %p87
      %p90 = scmp.ne.s32.totalorder %s73, %s89
      %p91 = scmp.eq.s32.totalorder %s39, 0
      %p92 = por %p90, %p91
      %s93 = ssub.s32 %s33, %s40
      %p94 = scmp.eq.s32.totalorder %s93, 0
      %s96 = sadd.s32 %s95, 1
      %s97 = scalar_select %p94, %s95, %s96
      %p100 = pneg %p94
      %p101 = scmp.eq.s32.totalorder %s33, 1
      %p102 = por %p100, %p101
      %p103 = scmp.ne.s32.totalorder %s95, %s98
      %p104 = scmp.eq.s32.totalorder %s33, 0
      %p105 = por %p103, %p104
      %p106 = scmp.ne.s32.totalorder %s95, %s98
      %p107 = scmp.eq.s32.totalorder %s38, 1
      %p108 = por %p106, %p107
      %p109 = scmp.ne.s32.totalorder %s98, %s99
      %p110 = scmp.eq.s32.totalorder %s38, 0
      %p111 = por %p109, %p110
      %p112 = scmp.ne.s32.totalorder %s98, %s99
      %p113 = scmp.eq.s32.totalorder %s39, 1
      %p114 = por %p112, %p113
      %p116 = scmp.ne.s32.totalorder %s99, %s115
      %p117 = scmp.eq.s32.totalorder %s39, 0
      %p118 = por %p116, %p117
      %s119 = ssub.s32 %s33, %s40
      %p120 = scmp.eq.s32.totalorder %s119, 0
      %s122 = sadd.s32 %s121, 1
      %s123 = scalar_select %p120, %s121, %s122
      %p126 = pneg %p120
      %p127 = scmp.eq.s32.totalorder %s33, 1
      %p128 = por %p126, %p127
      %p129 = scmp.ne.s32.totalorder %s121, %s124
      %p130 = scmp.eq.s32.totalorder %s33, 0
      %p131 = por %p129, %p130
      %p132 = scmp.ne.s32.totalorder %s121, %s124
      %p133 = scmp.eq.s32.totalorder %s38, 1
      %p134 = por %p132, %p133
      %p135 = scmp.ne.s32.totalorder %s124, %s125
      %p136 = scmp.eq.s32.totalorder %s38, 0
      %p137 = por %p135, %p136
      %p138 = scmp.ne.s32.totalorder %s124, %s125
      %p139 = scmp.eq.s32.totalorder %s39, 1
      %p140 = por %p138, %p139
      %p142 = scmp.ne.s32.totalorder %s125, %s141
      %p143 = scmp.eq.s32.totalorder %s39, 0
      %p144 = por %p142, %p143
      %s146 = sadd.s32 %s145, 1
      %p149 = scmp.eq.s32.totalorder %s33, 1
      %p150 = scmp.ne.s32.totalorder %s145, %s147
      %p151 = scmp.eq.s32.totalorder %s33, 0
      %p152 = por %p150, %p151
      %p153 = scmp.ne.s32.totalorder %s145, %s147
      %p154 = scmp.eq.s32.totalorder %s38, 1
      %p155 = por %p153, %p154
      %p156 = scmp.ne.s32.totalorder %s147, %s148
      %p157 = scmp.eq.s32.totalorder %s38, 0
      %p158 = por %p156, %p157
      %p159 = scmp.ne.s32.totalorder %s147, %s148
      %p160 = scmp.eq.s32.totalorder %s39, 1
      %p161 = por %p159, %p160
      %p163 = scmp.ne.s32.totalorder %s148, %s162
      %p164 = scmp.eq.s32.totalorder %s39, 0
      %p165 = por %p163, %p164
      %s167 = sadd.s32 %s166, 1
      %p170 = scmp.eq.s32.totalorder %s33, 1
      %p171 = scmp.ne.s32.totalorder %s166, %s168
      %p172 = scmp.eq.s32.totalorder %s33, 0
      %p173 = por %p171, %p172
      %p174 = scmp.ne.s32.totalorder %s166, %s168
      %p175 = scmp.eq.s32.totalorder %s38, 1
      %p176 = por %p174, %p175
      %p177 = scmp.ne.s32.totalorder %s168, %s169
      %p178 = scmp.eq.s32.totalorder %s38, 0
      %p179 = por %p177, %p178
      %p180 = scmp.ne.s32.totalorder %s168, %s169
      %p181 = scmp.eq.s32.totalorder %s39, 1
      %p182 = por %p180, %p181
      %p184 = scmp.ne.s32.totalorder %s169, %s183
      %p185 = scmp.eq.s32.totalorder %s39, 0
      %p186 = por %p184, %p185
      %s188 = sadd.s32 %s187, 1
      %p191 = scmp.eq.s32.totalorder %s33, 1
      %p192 = scmp.ne.s32.totalorder %s187, %s189
      %p193 = scmp.eq.s32.totalorder %s33, 0
      %p194 = por %p192, %p193
      %p195 = scmp.ne.s32.totalorder %s187, %s189
      %p196 = scmp.eq.s32.totalorder %s38, 1
      %p197 = por %p195, %p196
      %p198 = scmp.ne.s32.totalorder %s189, %s190
      %p199 = scmp.eq.s32.totalorder %s38, 0
      %p200 = por %p198, %p199
      %p201 = scmp.ne.s32.totalorder %s189, %s190
      %p202 = scmp.eq.s32.totalorder %s39, 1
      %p203 = por %p201, %p202
      %p205 = scmp.ne.s32.totalorder %s190, %s204
      %p206 = scmp.eq.s32.totalorder %s39, 0
      %p207 = por %p205, %p206
      %s209 = sadd.s32 %s208, 1
      %p212 = scmp.eq.s32.totalorder %s33, 1
      %p213 = scmp.ne.s32.totalorder %s208, %s210
      %p214 = scmp.eq.s32.totalorder %s33, 0
      %p215 = por %p213, %p214
      %p216 = scmp.ne.s32.totalorder %s208, %s210
      %p217 = scmp.eq.s32.totalorder %s38, 1
      %p218 = por %p216, %p217
      %p219 = scmp.ne.s32.totalorder %s210, %s211
      %p220 = scmp.eq.s32.totalorder %s38, 0
      %p221 = por %p219, %p220
      %p222 = scmp.ne.s32.totalorder %s210, %s211
      %p223 = scmp.eq.s32.totalorder %s39, 1
      %p224 = por %p222, %p223
      %p226 = scmp.ne.s32.totalorder %s211, %s225
      %p227 = scmp.eq.s32.totalorder %s39, 0
      %p228 = por %p226, %p227
      %s229 = ssub.s32 %s33, %s40
      %p230 = scmp.eq.s32.totalorder %s229, 0
      %s232 = sadd.s32 %s231, 1
      %s233 = scalar_select %p230, %s231, %s232
      %p236 = pneg %p230
      %p237 = scmp.eq.s32.totalorder %s33, 1
      %p238 = por %p236, %p237
      %p239 = scmp.ne.s32.totalorder %s231, %s234
      %p240 = scmp.eq.s32.totalorder %s33, 0
      %p241 = por %p239, %p240
      %p242 = scmp.ne.s32.totalorder %s231, %s234
      %p243 = scmp.eq.s32.totalorder %s38, 1
      %p244 = por %p242, %p243
      %p245 = scmp.ne.s32.totalorder %s234, %s235
      %p246 = scmp.eq.s32.totalorder %s38, 0
      %p247 = por %p245, %p246
      %p248 = scmp.ne.s32.totalorder %s234, %s235
      %p249 = scmp.eq.s32.totalorder %s39, 1
      %p250 = por %p248, %p249
      %p252 = scmp.ne.s32.totalorder %s235, %s251
      %p253 = scmp.eq.s32.totalorder %s39, 0
      %p254 = por %p252, %p253
      %s255 = ssub.s32 %s33, %s40
      %p256 = scmp.eq.s32.totalorder %s255, 0
      %s258 = sadd.s32 %s257, 1
      %s259 = scalar_select %p256, %s257, %s258
      %p262 = pneg %p256
      %p263 = scmp.eq.s32.totalorder %s33, 1
      %p264 = por %p262, %p263
      %p265 = scmp.ne.s32.totalorder %s257, %s260
      %p266 = scmp.eq.s32.totalorder %s33, 0
      %p267 = por %p265, %p266
      %p268 = scmp.ne.s32.totalorder %s257, %s260
      %p269 = scmp.eq.s32.totalorder %s38, 1
      %p270 = por %p268, %p269
      %p271 = scmp.ne.s32.totalorder %s260, %s261
      %p272 = scmp.eq.s32.totalorder %s38, 0
      %p273 = por %p271, %p272
      %p274 = scmp.ne.s32.totalorder %s260, %s261
      %p275 = scmp.eq.s32.totalorder %s39, 1
      %p276 = por %p274, %p275
      %p278 = scmp.ne.s32.totalorder %s261, %s277
      %p279 = scmp.eq.s32.totalorder %s39, 0
      %p280 = por %p278, %p279
      %p281 = scmp.le.s32.totalorder 1, %s33
      %p282 = scmp.lt.s32.totalorder %s33, 3
      %p283 = pnand %p281, %p282
      %p284 = pneg %p283
      // Predicated region
      $region9: #{tpu_custom_call.1} parent=5 // pred_check
        _
      $region10: #{tpu_custom_call.1} parent=5 // pred_check_branch
        %286 = sbr.rel (%p283) target = $region12
      $region11: #{tpu_custom_call.1} parent=5 // pred_region
        %s287 = ssub.s32 %s33, 1
        // Predicated region
        $region13: #{tpu_custom_call.1} parent=11 // pred_check
          %p288 = pneg %p158
        $region14: #{tpu_custom_call.1} parent=11 // pred_check_branch
          %290 = sbr.rel (%p288) target = $region16
        $region15: #{tpu_custom_call.1} parent=11 // pred_region
          %292 = vsyncadd [#allocation9], 0
          %s293 = sshll.u32 %s4, 4
          %s294 = int_to_ptr.hbm [resolvable:$true] %s293
          %s295 = sshll.u32 [#allocation10], 4
          %s296 = int_to_ptr.vmem [resolvable:$true] %s295
          %301 = dma.hbm_to_vmem [thread:$0]  %s294, 1024, %s296, [#allocation9], 128, 128, 8
        $region16: #{tpu_custom_call.1} parent=11 // pred_fallthru
          _
        // Predicated region
        $region17: #{tpu_custom_call.1} parent=11 // pred_check
          %p302 = pneg %p179
        $region18: #{tpu_custom_call.1} parent=11 // pred_check_branch
          %304 = sbr.rel (%p302) target = $region20
        $region19: #{tpu_custom_call.1} parent=11 // pred_region
          %306 = vsyncadd [#allocation12], 0
          %s307 = sshll.u32 %s5, 4
          %s308 = int_to_ptr.hbm [resolvable:$true] %s307
          %s309 = sshll.u32 [#allocation11], 4
          %s310 = int_to_ptr.vmem [resolvable:$true] %s309
          %315 = dma.hbm_to_vmem [thread:$0]  %s308, 1024, %s310, [#allocation12], 128, 128, 8
        $region20: #{tpu_custom_call.1} parent=11 // pred_fallthru
          _
        // Predicated region
        $region21: #{tpu_custom_call.1} parent=11 // pred_check
          %p316 = pneg %p200
        $region22: #{tpu_custom_call.1} parent=11 // pred_check_branch
          %318 = sbr.rel (%p316) target = $region24
        $region23: #{tpu_custom_call.1} parent=11 // pred_region
          %320 = vsyncadd [#allocation12], 0
          %s321 = sshll.u32 %s6, 4
          %s322 = int_to_ptr.hbm [resolvable:$true] %s321
          %s323 = sshll.u32 [#allocation13], 4
          %s324 = int_to_ptr.vmem [resolvable:$true] %s323
          %329 = dma.hbm_to_vmem [thread:$0]  %s322, 1024, %s324, [#allocation12], 128, 128, 8
        $region24: #{tpu_custom_call.1} parent=11 // pred_fallthru
          _
        // Predicated region
        $region25: #{tpu_custom_call.1} parent=11 // pred_check
          %p330 = pneg %p221
        $region26: #{tpu_custom_call.1} parent=11 // pred_check_branch
          %332 = sbr.rel (%p330) target = $region28
        $region27: #{tpu_custom_call.1} parent=11 // pred_region
          %334 = vsyncadd [#allocation15], 0
          %s335 = sshll.u32 %s7, 4
          %s336 = int_to_ptr.hbm [resolvable:$true] %s335
          %s337 = sshll.u32 [#allocation14], 4
          %s338 = int_to_ptr.vmem [resolvable:$true] %s337
          %343 = dma.hbm_to_vmem [thread:$0]  %s336, 1024, %s338, [#allocation15], 128, 128, 8
        $region28: #{tpu_custom_call.1} parent=11 // pred_fallthru
          _
      $region12: #{tpu_custom_call.1} parent=5 // pred_fallthru
        _
      %p344 = scmp.lt.s32.totalorder %s33, 2
      // Predicated region
      $region29: #{tpu_custom_call.1} parent=5 // pred_check
        %p345 = pneg %p344
      $region30: #{tpu_custom_call.1} parent=5 // pred_check_branch
        %347 = sbr.rel (%p345) target = $region32
      $region31: #{tpu_custom_call.1} parent=5 // pred_region
        // Predicated region
        $region33: #{tpu_custom_call.1} parent=31 // pred_check
          %p348 = pneg %p53
        $region34: #{tpu_custom_call.1} parent=31 // pred_check_branch
          %350 = sbr.rel (%p348) target = $region36
        $region35: #{tpu_custom_call.1} parent=31 // pred_region
          %s351 = sand.u32 %s43, 1
          %s352 = scalar_lea.sflag [#allocation3], %s351
          %s353 = sand.u32 %s43, 1
          %s354 = smul.addr %s353, 8
          %s355 = scalar_lea.vmem [#allocation2], %s354
          %357 = vsyncadd %s352, 0
          %s358 = smul.addr %s33, 8
          %s359 = scalar_lea.hbm %s0, %s358
          %s361 = sshll.u32 %s359, 4
          %s362 = int_to_ptr.hbm [resolvable:$true] %s361
          %s363 = sshll.u32 %s355, 4
          %s364 = int_to_ptr.vmem [resolvable:$true] %s363
          %366 = dma.hbm_to_vmem [thread:$0]  %s362, 128, %s364, %s352
        $region36: #{tpu_custom_call.1} parent=31 // pred_fallthru
          _
        // Predicated region
        $region37: #{tpu_custom_call.1} parent=31 // pred_check
          %p367 = pneg %p79
        $region38: #{tpu_custom_call.1} parent=31 // pred_check_branch
          %369 = sbr.rel (%p367) target = $region40
        $region39: #{tpu_custom_call.1} parent=31 // pred_region
          %s370 = sand.u32 %s33, 1
          %s371 = scalar_lea.sflag [#allocation6], %s370
          %s372 = sand.u32 %s69, 1
          %s373 = smul.addr %s372, 8
          %s374 = scalar_lea.vmem [#allocation5], %s373
          %376 = vsyncadd %s371, 0
          %s377 = smul.addr %s33, 8
          %s378 = scalar_lea.hbm %s1, %s377
          %s380 = sshll.u32 %s378, 4
          %s381 = int_to_ptr.hbm [resolvable:$true] %s380
          %s382 = sshll.u32 %s374, 4
          %s383 = int_to_ptr.vmem [resolvable:$true] %s382
          %385 = dma.hbm_to_vmem [thread:$0]  %s381, 128, %s383, %s371
        $region40: #{tpu_custom_call.1} parent=31 // pred_fallthru
          _
        // Predicated region
        $region41: #{tpu_custom_call.1} parent=31 // pred_check
          %p386 = pneg %p105
        $region42: #{tpu_custom_call.1} parent=31 // pred_check_branch
          %388 = sbr.rel (%p386) target = $region44
        $region43: #{tpu_custom_call.1} parent=31 // pred_region
          %s389 = sand.u32 %s33, 1
          %s390 = scalar_lea.sflag [#allocation6], %s389
          %s391 = sand.u32 %s95, 1
          %s392 = smul.addr %s391, 8
          %s393 = scalar_lea.vmem [#allocation7], %s392
          %395 = vsyncadd %s390, 0
          %s396 = smul.addr %s33, 8
          %s397 = scalar_lea.hbm %s2, %s396
          %s399 = sshll.u32 %s397, 4
          %s400 = int_to_ptr.hbm [resolvable:$true] %s399
          %s401 = sshll.u32 %s393, 4
          %s402 = int_to_ptr.vmem [resolvable:$true] %s401
          %404 = dma.hbm_to_vmem [thread:$0]  %s400, 128, %s402, %s390
        $region44: #{tpu_custom_call.1} parent=31 // pred_fallthru
          _
        // Predicated region
        $region45: #{tpu_custom_call.1} parent=31 // pred_check
          %p405 = pneg %p131
        $region46: #{tpu_custom_call.1} parent=31 // pred_check_branch
          %407 = sbr.rel (%p405) target = $region48
        $region47: #{tpu_custom_call.1} parent=31 // pred_region
          %s408 = sand.u32 %s33, 1
          %s409 = scalar_lea.sflag [#allocation9], %s408
          %s410 = sand.u32 %s121, 1
          %s411 = smul.addr %s410, 32
          %s412 = scalar_lea.vmem [#allocation8], %s411
          %414 = vsyncadd %s409, 0
          %s415 = smul.addr %s33, 4
          %s416 = smul.addr %s415, 8
          %s417 = scalar_lea.hbm %s3, %s416
          %s418 = sshll.u32 %s417, 4
          %s419 = int_to_ptr.hbm [resolvable:$true] %s418
          %s420 = sshll.u32 %s412, 4
          %s421 = int_to_ptr.vmem [resolvable:$true] %s420
          %426 = dma.hbm_to_vmem [thread:$0]  %s419, 512, %s421, %s409, 128, 128, 8
        $region48: #{tpu_custom_call.1} parent=31 // pred_fallthru
          _
      $region32: #{tpu_custom_call.1} parent=5 // pred_fallthru
        _
      %p427 = scmp.le.s32.totalorder 1, %s33
      %p428 = scmp.lt.s32.totalorder %s33, 3
      %p429 = pnand %p427, %p428
      %p430 = pneg %p429
      // Predicated region
      $region49: #{tpu_custom_call.1} parent=5 // pred_check
        _
      $region50: #{tpu_custom_call.1} parent=5 // pred_check_branch
        %432 = sbr.rel (%p429) target = $region52
      $region51: #{tpu_custom_call.1} parent=5 // pred_region
        %s433 = ssub.s32 %s33, 1
        %s434 = sand.u32 %s46, 1
        %s435 = scalar_lea.sflag [#allocation3], %s434
        %s436 = sand.u32 %s46, 1
        %s437 = smul.addr %s436, 8
        %s438 = scalar_lea.vmem [#allocation2], %s437
        // Predicated region
        $region53: #{tpu_custom_call.1} parent=51 // pred_check
          %p439 = pneg %p59
        $region54: #{tpu_custom_call.1} parent=51 // pred_check_branch
          %441 = sbr.rel (%p439) target = $region56
        $region55: #{tpu_custom_call.1} parent=51 // pred_region
          %443 = dma.done %s435, 128
        $region56: #{tpu_custom_call.1} parent=51 // pred_fallthru
          _
        %s444 = sand.u32 %s38, 1
        %s445 = scalar_lea.sflag [#allocation6], %s444
        %s446 = sand.u32 %s72, 1
        %s447 = smul.addr %s446, 8
        %s448 = scalar_lea.vmem [#allocation5], %s447
        // Predicated region
        $region57: #{tpu_custom_call.1} parent=51 // pred_check
          %p449 = pneg %p85
        $region58: #{tpu_custom_call.1} parent=51 // pred_check_branch
          %451 = sbr.rel (%p449) target = $region60
        $region59: #{tpu_custom_call.1} parent=51 // pred_region
          %453 = dma.done %s445, 128
        $region60: #{tpu_custom_call.1} parent=51 // pred_fallthru
          _
        %s454 = sand.u32 %s38, 1
        %s455 = scalar_lea.sflag [#allocation6], %s454
        %s456 = sand.u32 %s98, 1
        %s457 = smul.addr %s456, 8
        %s458 = scalar_lea.vmem [#allocation7], %s457
        // Predicated region
        $region61: #{tpu_custom_call.1} parent=51 // pred_check
          %p459 = pneg %p111
        $region62: #{tpu_custom_call.1} parent=51 // pred_check_branch
          %461 = sbr.rel (%p459) target = $region64
        $region63: #{tpu_custom_call.1} parent=51 // pred_region
          %463 = dma.done %s455, 128
        $region64: #{tpu_custom_call.1} parent=51 // pred_fallthru
          _
        %s464 = sand.u32 %s38, 1
        %s465 = scalar_lea.sflag [#allocation9], %s464
        %s466 = sand.u32 %s124, 1
        %s467 = smul.addr %s466, 32
        %s468 = scalar_lea.vmem [#allocation8], %s467
        // Predicated region
        $region65: #{tpu_custom_call.1} parent=51 // pred_check
          %p469 = pneg %p137
        $region66: #{tpu_custom_call.1} parent=51 // pred_check_branch
          %471 = sbr.rel (%p469) target = $region68
        $region67: #{tpu_custom_call.1} parent=51 // pred_region
          %473 = dma.done %s465, 512
        $region68: #{tpu_custom_call.1} parent=51 // pred_fallthru
          _
        // Predicated region
        $region69: #{tpu_custom_call.1} parent=51 // pred_check
          %p474 = pneg %p158
        $region70: #{tpu_custom_call.1} parent=51 // pred_check_branch
          %476 = sbr.rel (%p474) target = $region72
        $region71: #{tpu_custom_call.1} parent=51 // pred_region
          %478 = dma.done [#allocation9], 1024
        $region72: #{tpu_custom_call.1} parent=51 // pred_fallthru
          _
        // Predicated region
        $region73: #{tpu_custom_call.1} parent=51 // pred_check
          %p479 = pneg %p179
        $region74: #{tpu_custom_call.1} parent=51 // pred_check_branch
          %481 = sbr.rel (%p479) target = $region76
        $region75: #{tpu_custom_call.1} parent=51 // pred_region
          %483 = dma.done [#allocation12], 1024
        $region76: #{tpu_custom_call.1} parent=51 // pred_fallthru
          _
        // Predicated region
        $region77: #{tpu_custom_call.1} parent=51 // pred_check
          %p484 = pneg %p200
        $region78: #{tpu_custom_call.1} parent=51 // pred_check_branch
          %486 = sbr.rel (%p484) target = $region80
        $region79: #{tpu_custom_call.1} parent=51 // pred_region
          %488 = dma.done [#allocation12], 1024
        $region80: #{tpu_custom_call.1} parent=51 // pred_fallthru
          _
        // Predicated region
        $region81: #{tpu_custom_call.1} parent=51 // pred_check
          %p489 = pneg %p221
        $region82: #{tpu_custom_call.1} parent=51 // pred_check_branch
          %491 = sbr.rel (%p489) target = $region84
        $region83: #{tpu_custom_call.1} parent=51 // pred_region
          %493 = dma.done [#allocation15], 1024
        $region84: #{tpu_custom_call.1} parent=51 // pred_fallthru
          _
        %s494 = sand.u32 %s46, 1
        %s495 = scalar_lea.sflag [#allocation3], %s494
        %s496 = sand.u32 %s46, 1
        %s497 = smul.addr %s496, 8
        %s498 = scalar_lea.vmem [#allocation2], %s497
        %p499 = pneg %p59
        %p500 = pneg %p56
        %s501 = sand.u32 %s38, 1
        %s502 = scalar_lea.sflag [#allocation6], %s501
        %s503 = sand.u32 %s72, 1
        %s504 = smul.addr %s503, 8
        %s505 = scalar_lea.vmem [#allocation5], %s504
        %p506 = pneg %p85
        %p507 = pneg %p82
        %s508 = sand.u32 %s38, 1
        %s509 = scalar_lea.sflag [#allocation6], %s508
        %s510 = sand.u32 %s98, 1
        %s511 = smul.addr %s510, 8
        %s512 = scalar_lea.vmem [#allocation7], %s511
        %p513 = pneg %p111
        %p514 = pneg %p108
        %s515 = sand.u32 %s38, 1
        %s516 = scalar_lea.sflag [#allocation9], %s515
        %s517 = sand.u32 %s124, 1
        %s518 = smul.addr %s517, 32
        %s519 = scalar_lea.vmem [#allocation8], %s518
        %p520 = pneg %p137
        %p521 = pneg %p134
        %p522 = pneg %p158
        %p523 = pneg %p155
        %p524 = pneg %p179
        %p525 = pneg %p176
        %p526 = pneg %p200
        %p527 = pneg %p197
        %p528 = pneg %p221
        %p529 = pneg %p218
        %p530 = pneg %p247
        %p531 = pneg %p244
        %s532 = sand.u32 %s234, 1
        %s533 = scalar_lea.sflag [#allocation4], %s532
        %s534 = sand.u32 %s234, 1
        %s535 = smul.addr %s534, 8
        %s536 = scalar_lea.vmem [#allocation16], %s535
        %p537 = pneg %p273
        %p538 = pneg %p270
        %s539 = sand.u32 %s260, 1
        %s540 = scalar_lea.sflag [#allocation18], %s539
        %s541 = sand.u32 %s260, 1
        %s542 = smul.addr %s541, 32
        %s543 = scalar_lea.vmem [#allocation17], %s542
        %v544 = vld [vmem:[%s438] sm:$0xff]
        %v545 = vld [vmem:[%s448] sm:$0xff]
        %v546 = vld [vmem:[%s458] sm:$0xff]
        %v547 = vld [vmem:[#allocation10] sm:$0xff]
        %v548 = vld [vmem:[#allocation10 + $0x8] sm:$0xff]
        %v549 = vld [vmem:[#allocation10 + $0x10] sm:$0xff]
        %v550 = vld [vmem:[#allocation10 + $0x18] sm:$0xff]
        %v551 = vld [vmem:[#allocation10 + $0x20] sm:$0xff]
        %v552 = vld [vmem:[#allocation10 + $0x28] sm:$0xff]
        %v553 = vld [vmem:[#allocation10 + $0x30] sm:$0xff]
        %v554 = vld [vmem:[#allocation10 + $0x38] sm:$0xff]
        %vm555 = vcmask 523264
        %v557 = vsel %vm555, %v544, 0
        %559 = vmatpush.msra.mxu0 0.0
        %560 = vmatpush.msra.mxu0 0.0
        %561 = vmatpush.msra.mxu0 0.0
        %562 = vmatpush.msra.mxu0 0.0
        %563 = vmatpush.msra.mxu0 0.0
        %564 = vmatpush.msra.mxu0 0.0
        %565 = vmatpush.msra.mxu0 0.0
        %566 = vmatpush.msra.mxu0 0.0
        %567 = vmatpush.msra.mxu0 %v554
        %568 = vmatpush.msra.mxu0 %v553
        %569 = vmatpush.msra.mxu0 %v552
        %570 = vmatpush.msra.mxu0 %v551
        %571 = vmatpush.msra.mxu0 %v550
        %572 = vmatpush.msra.mxu0 %v549
        %573 = vmatpush.msra.mxu0 %v548
        %574 = vmatpush.msra.mxu0 %v547
        %575 = vmatmul.f32.gmra.mxu0 %v557
        %v576 = vpop.f32.mrf.mxu0
        %v577 = vadd.f32 0.0, %v576
        %578 = vdwg.mxu0
        %v579 = vmul.f32 %v577, 0.25
        %v580 = vld [vmem:[#allocation11] sm:$0xff]
        %v581 = vld [vmem:[#allocation11 + $0x8] sm:$0xff]
        %v582 = vld [vmem:[#allocation11 + $0x10] sm:$0xff]
        %v583 = vld [vmem:[#allocation11 + $0x18] sm:$0xff]
        %v584 = vld [vmem:[#allocation11 + $0x20] sm:$0xff]
        %v585 = vld [vmem:[#allocation11 + $0x28] sm:$0xff]
        %v586 = vld [vmem:[#allocation11 + $0x30] sm:$0xff]
        %v587 = vld [vmem:[#allocation11 + $0x38] sm:$0xff]
        %v589 = vsel %vm555, %v545, 0
        %591 = vmatpush.msra.mxu0 0.0
        %592 = vmatpush.msra.mxu0 0.0
        %593 = vmatpush.msra.mxu0 0.0
        %594 = vmatpush.msra.mxu0 0.0
        %595 = vmatpush.msra.mxu0 0.0
        %596 = vmatpush.msra.mxu0 0.0
        %597 = vmatpush.msra.mxu0 0.0
        %598 = vmatpush.msra.mxu0 0.0
        %599 = vmatpush.msra.mxu0 %v587
        %600 = vmatpush.msra.mxu0 %v586
        %601 = vmatpush.msra.mxu0 %v585
        %602 = vmatpush.msra.mxu0 %v584
        %603 = vmatpush.msra.mxu0 %v583
        %604 = vmatpush.msra.mxu0 %v582
        %605 = vmatpush.msra.mxu0 %v581
        %606 = vmatpush.msra.mxu0 %v580
        %607 = vmatmul.f32.gmra.mxu0 %v589
        %v608 = vpop.f32.mrf.mxu0
        %v609 = vadd.f32 0.0, %v608
        %610 = vdwg.mxu0
        %v611 = vld [vmem:[#allocation13] sm:$0xff]
        %v612 = vld [vmem:[#allocation13 + $0x8] sm:$0xff]
        %v613 = vld [vmem:[#allocation13 + $0x10] sm:$0xff]
        %v614 = vld [vmem:[#allocation13 + $0x18] sm:$0xff]
        %v615 = vld [vmem:[#allocation13 + $0x20] sm:$0xff]
        %v616 = vld [vmem:[#allocation13 + $0x28] sm:$0xff]
        %v617 = vld [vmem:[#allocation13 + $0x30] sm:$0xff]
        %v618 = vld [vmem:[#allocation13 + $0x38] sm:$0xff]
        %v620 = vsel %vm555, %v546, 0
        %622 = vmatpush.msra.mxu0 0.0
        %623 = vmatpush.msra.mxu0 0.0
        %624 = vmatpush.msra.mxu0 0.0
        %625 = vmatpush.msra.mxu0 0.0
        %626 = vmatpush.msra.mxu0 0.0
        %627 = vmatpush.msra.mxu0 0.0
        %628 = vmatpush.msra.mxu0 0.0
        %629 = vmatpush.msra.mxu0 0.0
        %630 = vmatpush.msra.mxu0 %v618
        %631 = vmatpush.msra.mxu0 %v617
        %632 = vmatpush.msra.mxu0 %v616
        %633 = vmatpush.msra.mxu0 %v615
        %634 = vmatpush.msra.mxu0 %v614
        %635 = vmatpush.msra.mxu0 %v613
        %636 = vmatpush.msra.mxu0 %v612
        %637 = vmatpush.msra.mxu0 %v611
        %638 = vmatmul.f32.gmra.mxu0 %v620
        %v639 = vpop.f32.mrf.mxu0
        %v640 = vadd.f32 0.0, %v639
        %641 = vdwg.mxu0
        %v642 = vld [vmem:[%s468] sm:$0xff]
        %v643 = vld [vmem:[%s468 + $0x8] sm:$0xff]
        %v644 = vld [vmem:[%s468 + $0x10] sm:$0xff]
        %v645 = vld [vmem:[%s468 + $0x18] sm:$0xff]
        %vm646 = vcmask 130048
        %v648 = vsel %vm646, %v579, 0
        %v651 = vsel %vm646, %v609, 0
        %653 = vmatpush.xpose.msra.mxu0 0.0
        %654 = vmatpush.xpose.msra.mxu0 0.0
        %655 = vmatpush.xpose.msra.mxu0 0.0
        %656 = vmatpush.xpose.msra.mxu0 0.0
        %657 = vmatpush.xpose.msra.mxu0 0.0
        %658 = vmatpush.xpose.msra.mxu0 0.0
        %659 = vmatpush.xpose.msra.mxu0 0.0
        %660 = vmatpush.xpose.msra.mxu0 0.0
        %661 = vmatpush.xpose.msra.mxu0 0.0
        %662 = vmatpush.xpose.msra.mxu0 0.0
        %663 = vmatpush.xpose.msra.mxu0 0.0
        %664 = vmatpush.xpose.msra.mxu0 0.0
        %665 = vmatpush.xpose.msra.mxu0 0.0
        %666 = vmatpush.xpose.msra.mxu0 0.0
        %667 = vmatpush.xpose.msra.mxu0 0.0
        %668 = vmatpush.xpose.msra.mxu0 %v651
        %669 = vmatmul.f32.gmra.mxu0 %v648
        %v670 = vpop.f32.mrf.mxu0
        %v671 = vadd.f32 %v642, %v670
        %672 = vdwg.mxu0
        %vm673 = vcmask 64512
        %v674 = vsel %vm673, %v671, -inf
        %675 = vmax.xlane.f32.xlu0 %v674
        %v676 = vpop.xlane.xlu0 %675
        %v677 = vsub.f32 %v671, %v676
        %v678 = vmul.f32 %v677, 1.442695
        %v679 = vpow.pop %v678
        %v680 = vsel %vm673, %v679, 0.0
        %681 = vadd.xlane.f32.xlu0 %v680
        %v682 = vpop.xlane.xlu0 %681
        %v683 = vrcp.pop %v682
        %v684 = vmul.f32 %v682, %v683
        %v685 = vsub.f32 1.0, %v684
        %v686 = vmul.f32 %v683, %v685
        %v687 = vadd.f32 %v683, %v686
        %vm688 = vweird.f32 %v682
        %vm689 = vweird.f32 %v683
        %vm690 = vmor %vm688, %vm689
        %v691 = vsel %vm690, %v683, %v687
        %v692 = vand.u32 2147483647, %v682
        %vm693 = vcmp.eq.f32.partialorder %v692, 8.507059e+37
        %v694 = vand.u32 %v682, 2147483648
        %v695 = vor.u32 1.1754944e-38, %v694
        %v696 = vsel %vm693, %v695, %v691
        %v697 = vmul.f32 %v679, %v696
        %698 = vst.msk [vmem:[%s543] sm:$0xff] %vm673, %v697
        %v700 = vsel %vm673, %v697, 0
        %702 = vmatpush.msra.mxu0 0.0
        %703 = vmatpush.msra.mxu0 0.0
        %704 = vmatpush.msra.mxu0 0.0
        %705 = vmatpush.msra.mxu0 0.0
        %706 = vmatpush.msra.mxu0 0.0
        %707 = vmatpush.msra.mxu0 0.0
        %708 = vmatpush.msra.mxu0 0.0
        %709 = vmatpush.msra.mxu0 0.0
        %710 = vmatpush.msra.mxu0 0.0
        %711 = vmatpush.msra.mxu0 0.0
        %712 = vmatpush.msra.mxu0 0.0
        %713 = vmatpush.msra.mxu0 0.0
        %714 = vmatpush.msra.mxu0 0.0
        %715 = vmatpush.msra.mxu0 0.0
        %716 = vmatpush.msra.mxu0 0.0
        %717 = vmatpush.msra.mxu0 %v640
        %718 = vmatmul.f32.gmra.mxu0 %v700
        %v719 = vpop.f32.mrf.mxu0
        %v720 = vadd.f32 0.0, %v719
        %721 = vdwg.mxu0
        %v722 = vld [vmem:[#allocation14] sm:$0xff]
        %v723 = vld [vmem:[#allocation14 + $0x8] sm:$0xff]
        %v725 = vsel %vm646, %v720, 0
        %727 = vmatpush.msra.mxu0 0.0
        %728 = vmatpush.msra.mxu0 0.0
        %729 = vmatpush.msra.mxu0 0.0
        %730 = vmatpush.msra.mxu0 0.0
        %731 = vmatpush.msra.mxu0 0.0
        %732 = vmatpush.msra.mxu0 0.0
        %733 = vmatpush.msra.mxu0 0.0
        %734 = vmatpush.msra.mxu0 0.0
        %735 = vmatpush.msra.mxu0 0.0
        %736 = vmatpush.msra.mxu0 0.0
        %737 = vmatpush.msra.mxu0 0.0
        %738 = vmatpush.msra.mxu0 0.0
        %739 = vmatpush.msra.mxu0 0.0
        %740 = vmatpush.msra.mxu0 0.0
        %741 = vmatpush.msra.mxu0 %v723
        %742 = vmatpush.msra.mxu0 %v722
        %743 = vmatmul.f32.gmra.mxu0 %v725
        %v744 = vpop.f32.mrf.mxu0
        %v745 = vadd.f32 0.0, %v744
        %746 = vdwg.mxu0
        %v747 = vadd.f32 %v544, %v745
        %748 = vrot.lane.b32.xlu0 %v579, 112
        %v749 = vpop.permute.xlu0 %748
        %750 = vrot.lane.b32.xlu0 %v609, 112
        %v751 = vpop.permute.xlu0 %750
        %v752 = vsel %vm646, %v749, 0
        %v754 = vsel %vm646, %v751, 0
        %756 = vmatpush.xpose.msra.mxu0 0.0
        %757 = vmatpush.xpose.msra.mxu0 0.0
        %758 = vmatpush.xpose.msra.mxu0 0.0
        %759 = vmatpush.xpose.msra.mxu0 0.0
        %760 = vmatpush.xpose.msra.mxu0 0.0
        %761 = vmatpush.xpose.msra.mxu0 0.0
        %762 = vmatpush.xpose.msra.mxu0 0.0
        %763 = vmatpush.xpose.msra.mxu0 0.0
        %764 = vmatpush.xpose.msra.mxu0 0.0
        %765 = vmatpush.xpose.msra.mxu0 0.0
        %766 = vmatpush.xpose.msra.mxu0 0.0
        %767 = vmatpush.xpose.msra.mxu0 0.0
        %768 = vmatpush.xpose.msra.mxu0 0.0
        %769 = vmatpush.xpose.msra.mxu0 0.0
        %770 = vmatpush.xpose.msra.mxu0 0.0
        %771 = vmatpush.xpose.msra.mxu0 %v754
        %772 = vmatmul.f32.gmra.mxu0 %v752
        %v773 = vpop.f32.mrf.mxu0
        %v774 = vadd.f32 %v643, %v773
        %775 = vdwg.mxu0
        %v776 = vsel %vm673, %v774, -inf
        %777 = vmax.xlane.f32.xlu0 %v776
        %v778 = vpop.xlane.xlu0 %777
        %v779 = vsub.f32 %v774, %v778
        %v780 = vmul.f32 %v779, 1.442695
        %v781 = vpow.pop %v780
        %v782 = vsel %vm673, %v781, 0.0
        %783 = vadd.xlane.f32.xlu0 %v782
        %v784 = vpop.xlane.xlu0 %783
        %v785 = vrcp.pop %v784
        %v786 = vmul.f32 %v784, %v785
        %v787 = vsub.f32 1.0, %v786
        %v788 = vmul.f32 %v785, %v787
        %v789 = vadd.f32 %v785, %v788
        %vm790 = vweird.f32 %v784
        %vm791 = vweird.f32 %v785
        %vm792 = vmor %vm790, %vm791
        %v793 = vsel %vm792, %v785, %v789
        %v794 = vand.u32 2147483647, %v784
        %vm795 = vcmp.eq.f32.partialorder %v794, 8.507059e+37
        %v796 = vand.u32 %v784, 2147483648
        %v797 = vor.u32 1.1754944e-38, %v796
        %v798 = vsel %vm795, %v797, %v793
        %v799 = vmul.f32 %v781, %v798
        %s800 = scalar_lea.vmem %s543, 8 [#allocation17]
        %801 = vst.msk [vmem:[%s800] sm:$0xff] %vm673, %v799
        %803 = vrot.lane.b32.xlu0 %v640, 112
        %v804 = vpop.permute.xlu0 %803
        %v807 = vsel %vm673, %v799, 0
        %809 = vmatpush.msra.mxu0 0.0
        %810 = vmatpush.msra.mxu0 0.0
        %811 = vmatpush.msra.mxu0 0.0
        %812 = vmatpush.msra.mxu0 0.0
        %813 = vmatpush.msra.mxu0 0.0
        %814 = vmatpush.msra.mxu0 0.0
        %815 = vmatpush.msra.mxu0 0.0
        %816 = vmatpush.msra.mxu0 0.0
        %817 = vmatpush.msra.mxu0 0.0
        %818 = vmatpush.msra.mxu0 0.0
        %819 = vmatpush.msra.mxu0 0.0
        %820 = vmatpush.msra.mxu0 0.0
        %821 = vmatpush.msra.mxu0 0.0
        %822 = vmatpush.msra.mxu0 0.0
        %823 = vmatpush.msra.mxu0 0.0
        %824 = vmatpush.msra.mxu0 %v804
        %825 = vmatmul.f32.gmra.mxu0 %v807
        %v826 = vpop.f32.mrf.mxu0
        %v827 = vadd.f32 0.0, %v826
        %828 = vdwg.mxu0
        %v829 = vld [vmem:[#allocation14 + $0x10] sm:$0xff]
        %v830 = vld [vmem:[#allocation14 + $0x18] sm:$0xff]
        %v832 = vsel %vm646, %v827, 0
        %834 = vmatpush.msra.mxu0 0.0
        %835 = vmatpush.msra.mxu0 0.0
        %836 = vmatpush.msra.mxu0 0.0
        %837 = vmatpush.msra.mxu0 0.0
        %838 = vmatpush.msra.mxu0 0.0
        %839 = vmatpush.msra.mxu0 0.0
        %840 = vmatpush.msra.mxu0 0.0
        %841 = vmatpush.msra.mxu0 0.0
        %842 = vmatpush.msra.mxu0 0.0
        %843 = vmatpush.msra.mxu0 0.0
        %844 = vmatpush.msra.mxu0 0.0
        %845 = vmatpush.msra.mxu0 0.0
        %846 = vmatpush.msra.mxu0 0.0
        %847 = vmatpush.msra.mxu0 0.0
        %848 = vmatpush.msra.mxu0 %v830
        %849 = vmatpush.msra.mxu0 %v829
        %850 = vmatmul.f32.gmra.mxu0 %v832
        %v851 = vpop.f32.mrf.mxu0
        %v852 = vadd.f32 0.0, %v851
        %853 = vdwg.mxu0
        %v854 = vadd.f32 %v747, %v852
        %855 = vrot.lane.b32.xlu0 %v579, 96
        %v856 = vpop.permute.xlu0 %855
        %857 = vrot.lane.b32.xlu0 %v609, 96
        %v858 = vpop.permute.xlu0 %857
        %v859 = vsel %vm646, %v856, 0
        %v861 = vsel %vm646, %v858, 0
        %863 = vmatpush.xpose.msra.mxu0 0.0
        %864 = vmatpush.xpose.msra.mxu0 0.0
        %865 = vmatpush.xpose.msra.mxu0 0.0
        %866 = vmatpush.xpose.msra.mxu0 0.0
        %867 = vmatpush.xpose.msra.mxu0 0.0
        %868 = vmatpush.xpose.msra.mxu0 0.0
        %869 = vmatpush.xpose.msra.mxu0 0.0
        %870 = vmatpush.xpose.msra.mxu0 0.0
        %871 = vmatpush.xpose.msra.mxu0 0.0
        %872 = vmatpush.xpose.msra.mxu0 0.0
        %873 = vmatpush.xpose.msra.mxu0 0.0
        %874 = vmatpush.xpose.msra.mxu0 0.0
        %875 = vmatpush.xpose.msra.mxu0 0.0
        %876 = vmatpush.xpose.msra.mxu0 0.0
        %877 = vmatpush.xpose.msra.mxu0 0.0
        %878 = vmatpush.xpose.msra.mxu0 %v861
        %879 = vmatmul.f32.gmra.mxu0 %v859
        %v880 = vpop.f32.mrf.mxu0
        %v881 = vadd.f32 %v644, %v880
        %882 = vdwg.mxu0
        %v883 = vsel %vm673, %v881, -inf
        %884 = vmax.xlane.f32.xlu0 %v883
        %v885 = vpop.xlane.xlu0 %884
        %v886 = vsub.f32 %v881, %v885
        %v887 = vmul.f32 %v886, 1.442695
        %v888 = vpow.pop %v887
        %v889 = vsel %vm673, %v888, 0.0
        %890 = vadd.xlane.f32.xlu0 %v889
        %v891 = vpop.xlane.xlu0 %890
        %v892 = vrcp.pop %v891
        %v893 = vmul.f32 %v891, %v892
        %v894 = vsub.f32 1.0, %v893
        %v895 = vmul.f32 %v892, %v894
        %v896 = vadd.f32 %v892, %v895
        %vm897 = vweird.f32 %v891
        %vm898 = vweird.f32 %v892
        %vm899 = vmor %vm897, %vm898
        %v900 = vsel %vm899, %v892, %v896
        %v901 = vand.u32 2147483647, %v891
        %vm902 = vcmp.eq.f32.partialorder %v901, 8.507059e+37
        %v903 = vand.u32 %v891, 2147483648
        %v904 = vor.u32 1.1754944e-38, %v903
        %v905 = vsel %vm902, %v904, %v900
        %v906 = vmul.f32 %v888, %v905
        %s907 = scalar_lea.vmem %s543, 16 [#allocation17]
        %908 = vst.msk [vmem:[%s907] sm:$0xff] %vm673, %v906
        %909 = vrot.lane.b32.xlu0 %v640, 96
        %v910 = vpop.permute.xlu0 %909
        %v913 = vsel %vm673, %v906, 0
        %915 = vmatpush.msra.mxu0 0.0
        %916 = vmatpush.msra.mxu0 0.0
        %917 = vmatpush.msra.mxu0 0.0
        %918 = vmatpush.msra.mxu0 0.0
        %919 = vmatpush.msra.mxu0 0.0
        %920 = vmatpush.msra.mxu0 0.0
        %921 = vmatpush.msra.mxu0 0.0
        %922 = vmatpush.msra.mxu0 0.0
        %923 = vmatpush.msra.mxu0 0.0
        %924 = vmatpush.msra.mxu0 0.0
        %925 = vmatpush.msra.mxu0 0.0
        %926 = vmatpush.msra.mxu0 0.0
        %927 = vmatpush.msra.mxu0 0.0
        %928 = vmatpush.msra.mxu0 0.0
        %929 = vmatpush.msra.mxu0 0.0
        %930 = vmatpush.msra.mxu0 %v910
        %931 = vmatmul.f32.gmra.mxu0 %v913
        %v932 = vpop.f32.mrf.mxu0
        %v933 = vadd.f32 0.0, %v932
        %934 = vdwg.mxu0
        %v935 = vld [vmem:[#allocation14 + $0x20] sm:$0xff]
        %v936 = vld [vmem:[#allocation14 + $0x28] sm:$0xff]
        %v938 = vsel %vm646, %v933, 0
        %940 = vmatpush.msra.mxu0 0.0
        %941 = vmatpush.msra.mxu0 0.0
        %942 = vmatpush.msra.mxu0 0.0
        %943 = vmatpush.msra.mxu0 0.0
        %944 = vmatpush.msra.mxu0 0.0
        %945 = vmatpush.msra.mxu0 0.0
        %946 = vmatpush.msra.mxu0 0.0
        %947 = vmatpush.msra.mxu0 0.0
        %948 = vmatpush.msra.mxu0 0.0
        %949 = vmatpush.msra.mxu0 0.0
        %950 = vmatpush.msra.mxu0 0.0
        %951 = vmatpush.msra.mxu0 0.0
        %952 = vmatpush.msra.mxu0 0.0
        %953 = vmatpush.msra.mxu0 0.0
        %954 = vmatpush.msra.mxu0 %v936
        %955 = vmatpush.msra.mxu0 %v935
        %956 = vmatmul.f32.gmra.mxu0 %v938
        %v957 = vpop.f32.mrf.mxu0
        %v958 = vadd.f32 0.0, %v957
        %959 = vdwg.mxu0
        %v960 = vadd.f32 %v854, %v958
        %961 = vrot.lane.b32.xlu0 %v579, 80
        %v962 = vpop.permute.xlu0 %961
        %963 = vrot.lane.b32.xlu0 %v609, 80
        %v964 = vpop.permute.xlu0 %963
        %v965 = vsel %vm646, %v962, 0
        %v967 = vsel %vm646, %v964, 0
        %969 = vmatpush.xpose.msra.mxu0 0.0
        %970 = vmatpush.xpose.msra.mxu0 0.0
        %971 = vmatpush.xpose.msra.mxu0 0.0
        %972 = vmatpush.xpose.msra.mxu0 0.0
        %973 = vmatpush.xpose.msra.mxu0 0.0
        %974 = vmatpush.xpose.msra.mxu0 0.0
        %975 = vmatpush.xpose.msra.mxu0 0.0
        %976 = vmatpush.xpose.msra.mxu0 0.0
        %977 = vmatpush.xpose.msra.mxu0 0.0
        %978 = vmatpush.xpose.msra.mxu0 0.0
        %979 = vmatpush.xpose.msra.mxu0 0.0
        %980 = vmatpush.xpose.msra.mxu0 0.0
        %981 = vmatpush.xpose.msra.mxu0 0.0
        %982 = vmatpush.xpose.msra.mxu0 0.0
        %983 = vmatpush.xpose.msra.mxu0 0.0
        %984 = vmatpush.xpose.msra.mxu0 %v967
        %985 = vmatmul.f32.gmra.mxu0 %v965
        %v986 = vpop.f32.mrf.mxu0
        %v987 = vadd.f32 %v645, %v986
        %988 = vdwg.mxu0
        %v989 = vsel %vm673, %v987, -inf
        %990 = vmax.xlane.f32.xlu0 %v989
        %v991 = vpop.xlane.xlu0 %990
        %v992 = vsub.f32 %v987, %v991
        %v993 = vmul.f32 %v992, 1.442695
        %v994 = vpow.pop %v993
        %v995 = vsel %vm673, %v994, 0.0
        %996 = vadd.xlane.f32.xlu0 %v995
        %v997 = vpop.xlane.xlu0 %996
        %v998 = vrcp.pop %v997
        %v999 = vmul.f32 %v997, %v998
        %v1000 = vsub.f32 1.0, %v999
        %v1001 = vmul.f32 %v998, %v1000
        %v1002 = vadd.f32 %v998, %v1001
        %vm1003 = vweird.f32 %v997
        %vm1004 = vweird.f32 %v998
        %vm1005 = vmor %vm1003, %vm1004
        %v1006 = vsel %vm1005, %v998, %v1002
        %v1007 = vand.u32 2147483647, %v997
        %vm1008 = vcmp.eq.f32.partialorder %v1007, 8.507059e+37
        %v1009 = vand.u32 %v997, 2147483648
        %v1010 = vor.u32 1.1754944e-38, %v1009
        %v1011 = vsel %vm1008, %v1010, %v1006
        %v1012 = vmul.f32 %v994, %v1011
        %s1013 = scalar_lea.vmem %s543, 24 [#allocation17]
        %1014 = vst.msk [vmem:[%s1013] sm:$0xff] %vm673, %v1012
        %1015 = vrot.lane.b32.xlu0 %v640, 80
        %v1016 = vpop.permute.xlu0 %1015
        %v1019 = vsel %vm673, %v1012, 0
        %1021 = vmatpush.msra.mxu0 0.0
        %1022 = vmatpush.msra.mxu0 0.0
        %1023 = vmatpush.msra.mxu0 0.0
        %1024 = vmatpush.msra.mxu0 0.0
        %1025 = vmatpush.msra.mxu0 0.0
        %1026 = vmatpush.msra.mxu0 0.0
        %1027 = vmatpush.msra.mxu0 0.0
        %1028 = vmatpush.msra.mxu0 0.0
        %1029 = vmatpush.msra.mxu0 0.0
        %1030 = vmatpush.msra.mxu0 0.0
        %1031 = vmatpush.msra.mxu0 0.0
        %1032 = vmatpush.msra.mxu0 0.0
        %1033 = vmatpush.msra.mxu0 0.0
        %1034 = vmatpush.msra.mxu0 0.0
        %1035 = vmatpush.msra.mxu0 0.0
        %1036 = vmatpush.msra.mxu0 %v1016
        %1037 = vmatmul.f32.gmra.mxu0 %v1019
        %v1038 = vpop.f32.mrf.mxu0
        %v1039 = vadd.f32 0.0, %v1038
        %1040 = vdwg.mxu0
        %v1041 = vld [vmem:[#allocation14 + $0x30] sm:$0xff]
        %v1042 = vld [vmem:[#allocation14 + $0x38] sm:$0xff]
        %v1044 = vsel %vm646, %v1039, 0
        %1046 = vmatpush.msra.mxu0 0.0
        %1047 = vmatpush.msra.mxu0 0.0
        %1048 = vmatpush.msra.mxu0 0.0
        %1049 = vmatpush.msra.mxu0 0.0
        %1050 = vmatpush.msra.mxu0 0.0
        %1051 = vmatpush.msra.mxu0 0.0
        %1052 = vmatpush.msra.mxu0 0.0
        %1053 = vmatpush.msra.mxu0 0.0
        %1054 = vmatpush.msra.mxu0 0.0
        %1055 = vmatpush.msra.mxu0 0.0
        %1056 = vmatpush.msra.mxu0 0.0
        %1057 = vmatpush.msra.mxu0 0.0
        %1058 = vmatpush.msra.mxu0 0.0
        %1059 = vmatpush.msra.mxu0 0.0
        %1060 = vmatpush.msra.mxu0 %v1042
        %1061 = vmatpush.msra.mxu0 %v1041
        %1062 = vmatmul.f32.gmra.mxu0 %v1044
        %v1063 = vpop.f32.mrf.mxu0
        %v1064 = vadd.f32 0.0, %v1063
        %1065 = vdwg.mxu0
        %v1066 = vadd.f32 %v960, %v1064
        %v1067 = vsel %vm555, %v1066, 0.0
        %1068 = vadd.xlane.f32.xlu0 %v1067
        %v1069 = vpop.xlane.xlu0 %1068
        %v1070 = vrcp.pop 64.0
        %v1071 = vmul.f32 64.0, %v1070
        %v1072 = vsub.f32 1.0, %v1071
        %v1073 = vmul.f32 %v1070, %v1072
        %v1074 = vadd.f32 %v1070, %v1073
        %vm1075 = vweird.f32 %v1070
        %v1076 = vsel %vm1075, %v1070, %v1074
        %v1077 = vmul.f32 %v1069, %v1076
        %v1078 = vsub.f32 %v1066, %v1077
        %v1079 = vmul.f32 %v1078, %v1078
        %v1080 = vsel %vm555, %v1079, 0.0
        %1081 = vadd.xlane.f32.xlu0 %v1080
        %v1082 = vpop.xlane.xlu0 %1081
        %v1083 = vmul.f32 %v1082, %v1076
        %v1084 = vadd.f32 %v1083, 1e-05
        %v1085 = vrsqrt.pop %v1084
        %v1086 = vmul.f32 %v1085, %v1084
        %v1087 = vmul.f32 %v1086, %v1085
        %v1088 = vmul.f32 0.5, %v1087
        %v1089 = vsub.f32 1.5, %v1088
        %v1090 = vmul.f32 %v1085, %v1089
        %vm1091 = vweird.f32 %v1084
        %vm1092 = vweird.f32 %v1085
        %vm1093 = vmor %vm1091, %vm1092
        %v1094 = vsel %vm1093, %v1085, %v1090
        %v1095 = vmul.f32 %v1078, %v1094
        %1096 = vst.msk [vmem:[%s536] sm:$0xff] %vm555, %v1095
        %s1097 = sand.u32 %s234, 1
        %s1098 = scalar_lea.sflag [#allocation4], %s1097
        %s1099 = sand.u32 %s234, 1
        %s1100 = smul.addr %s1099, 8
        %s1101 = scalar_lea.vmem [#allocation16], %s1100
        %s1102 = sand.u32 %s260, 1
        %s1103 = scalar_lea.sflag [#allocation18], %s1102
        %s1104 = sand.u32 %s260, 1
        %s1105 = smul.addr %s1104, 32
        %s1106 = scalar_lea.vmem [#allocation17], %s1105
        // Predicated region
        $region85: #{tpu_custom_call.1} parent=51 // pred_check
          %p1107 = pneg %p244
        $region86: #{tpu_custom_call.1} parent=51 // pred_check_branch
          %1109 = sbr.rel (%p1107) target = $region88
        $region87: #{tpu_custom_call.1} parent=51 // pred_region
          %1111 = vsyncadd %s1098, 0
          %s1112 = smul.addr %s38, 8
          %s1113 = scalar_lea.hbm %s8, %s1112
          %s1115 = sshll.u32 %s1101, 4
          %s1116 = int_to_ptr.vmem [resolvable:$true] %s1115
          %s1117 = sshll.u32 %s1113, 4
          %s1118 = int_to_ptr.hbm [resolvable:$true] %s1117
          %1120 = dma.vmem_to_hbm [thread:$0]  %s1116, 128, %s1118, %s1098
        $region88: #{tpu_custom_call.1} parent=51 // pred_fallthru
          _
        // Predicated region
        $region89: #{tpu_custom_call.1} parent=51 // pred_check
          %p1121 = pneg %p270
        $region90: #{tpu_custom_call.1} parent=51 // pred_check_branch
          %1123 = sbr.rel (%p1121) target = $region92
        $region91: #{tpu_custom_call.1} parent=51 // pred_region
          %1125 = vsyncadd %s1103, 0
          %s1126 = smul.addr %s38, 4
          %s1127 = smul.addr %s1126, 8
          %s1128 = scalar_lea.hbm %s9, %s1127
          %s1129 = sshll.u32 %s1106, 4
          %s1130 = int_to_ptr.vmem [resolvable:$true] %s1129
          %s1131 = sshll.u32 %s1128, 4
          %s1132 = int_to_ptr.hbm [resolvable:$true] %s1131
          %1137 = dma.vmem_to_hbm [thread:$0]  %s1130, 512, %s1132, %s1103, 128, 128, 8
        $region92: #{tpu_custom_call.1} parent=51 // pred_fallthru
          _
      $region52: #{tpu_custom_call.1} parent=5 // pred_fallthru
        _
      %p1138 = scmp.le.s32.totalorder 2, %s33
      // Predicated region
      $region93: #{tpu_custom_call.1} parent=5 // pred_check
        %p1139 = pneg %p1138
      $region94: #{tpu_custom_call.1} parent=5 // pred_check_branch
        %1141 = sbr.rel (%p1139) target = $region96
      $region95: #{tpu_custom_call.1} parent=5 // pred_region
        %s1142 = ssub.s32 %s33, 2
        // Predicated region
        $region97: #{tpu_custom_call.1} parent=95 // pred_check
          %p1143 = pneg %p250
        $region98: #{tpu_custom_call.1} parent=95 // pred_check_branch
          %1145 = sbr.rel (%p1143) target = $region100
        $region99: #{tpu_custom_call.1} parent=95 // pred_region
          %s1146 = sand.u32 %s235, 1
          %s1147 = scalar_lea.sflag [#allocation4], %s1146
          %s1148 = sand.u32 %s235, 1
          %s1149 = smul.addr %s1148, 8
          %s1150 = scalar_lea.vmem [#allocation16], %s1149
          %1152 = dma.done %s1147, 128
        $region100: #{tpu_custom_call.1} parent=95 // pred_fallthru
          _
        // Predicated region
        $region101: #{tpu_custom_call.1} parent=95 // pred_check
          %p1153 = pneg %p276
        $region102: #{tpu_custom_call.1} parent=95 // pred_check_branch
          %1155 = sbr.rel (%p1153) target = $region104
        $region103: #{tpu_custom_call.1} parent=95 // pred_region
          %s1156 = sand.u32 %s261, 1
          %s1157 = scalar_lea.sflag [#allocation18], %s1156
          %s1158 = sand.u32 %s261, 1
          %s1159 = smul.addr %s1158, 32
          %s1160 = scalar_lea.vmem [#allocation17], %s1159
          %1162 = dma.done %s1157, 512
        $region104: #{tpu_custom_call.1} parent=95 // pred_fallthru
          _
      $region96: #{tpu_custom_call.1} parent=5 // pred_fallthru
        _
    $region6: #{tpu_custom_call.1} parent=1 // loop_footer
      %s37 = sadd.s32 1, %s33
    $region7: #{tpu_custom_call.1} parent=1 // loop_footer_branch
      %32 = sbr.rel target = $region3
    $region8: #{tpu_custom_call.1} parent=1 // loop_exit
      _
    %1163 = vsyncpa [#allocation3], 1
    %s1164 = scalar_lea.sflag [#allocation3], 1
    %1165 = vsyncpa %s1164, 1
    %1166 = vsyncpa [#allocation6], 1
    %s1167 = scalar_lea.sflag [#allocation6], 1
    %1168 = vsyncpa %s1167, 1
    %1169 = vsyncpa [#allocation9], 1
    %s1170 = scalar_lea.sflag [#allocation9], 1
    %1171 = vsyncpa %s1170, 1
    %1172 = vsyncpa [#allocation12], 1
    %1173 = vsyncpa [#allocation15], 1
    %1174 = vsyncpa [#allocation4], 1
    %s1175 = scalar_lea.sflag [#allocation4], 1
    %1176 = vsyncpa %s1175, 1
    %1177 = vsyncpa [#allocation18], 1
    %s1178 = scalar_lea.sflag [#allocation18], 1
    %1179 = vsyncpa %s1178, 1

</llo_original>
